<compile_context>
chip_gen: v6e
topology: v6e:2x2x1
jax: 0.10.0
libtpu: 0.0.40
codegen_flags: <defaults>
</compile_context>

<pallas_src>
import jax
import jax.numpy as jnp
from jax.experimental import pallas as pl
from jax.experimental.pallas import tpu as pltpu


def _make_decoder_kernel(B, S, T, H, E, V):
    """Builds the per-timestep decoder kernel (grid = (T,), sequential)."""

    def kernel(emb_ref, enc_out_ref, pk_ref, h0_ref, mask_ref,
               w_q_ref, b_q_ref, w_e_ref,
               w_ih_e_ref, w_ih_c_ref, w_hh_ref, b_ih_ref, b_hh_ref,
               w_m_h_ref, w_m_c_ref, w_m_e_ref, b_m_ref,
               w_g_ref, b_g_ref,
               dec_out_ref, logp_ref,
               h_scr):
        t = pl.program_id(0)

        @pl.when(t == 0)
        def _init():
            # initial hidden was computed outside; just load the carry.
            h_scr[...] = h0_ref[...]

        emb = emb_ref[0]                                           # (B, E)
        h = h_scr[...]                                             # (B, H)

        # --- Bahdanau attention ------------------------------------------------
        proj_q = jnp.dot(h, w_q_ref[...],
                         preferred_element_type=jnp.float32) + b_q_ref[...]
        e_pre = jnp.tanh(proj_q[:, None, :] + pk_ref[...])         # (B, S, H)
        energy = jnp.sum(e_pre * w_e_ref[...], axis=-1)            # (B, S)
        energy = jnp.where(mask_ref[...] == 0.0, -jnp.inf, energy)
        # NOTE: original module bmm's the masked energy (not alphas) with value.
        context = jnp.einsum(
            'bqs,bsk->bqk', energy[:, None, :], enc_out_ref[...],
            preferred_element_type=jnp.float32).reshape(B, 2 * H)  # (B, 2H)

        # --- single-layer GRU cell (PyTorch gate order: r, z, n) ----------------
        # concat(emb, context) @ w_ih  ==  emb @ w_ih[:E] + context @ w_ih[E:]
        gi = (jnp.dot(emb, w_ih_e_ref[...], preferred_element_type=jnp.float32)
              + jnp.dot(context, w_ih_c_ref[...],
                        preferred_element_type=jnp.float32)
              + b_ih_ref[...])                                     # (B, 3H)
        gh = jnp.dot(h, w_hh_ref[...],
                     preferred_element_type=jnp.float32) + b_hh_ref[...]
        r = jax.nn.sigmoid(gi[:, 0:H] + gh[:, 0:H])
        z = jax.nn.sigmoid(gi[:, H:2 * H] + gh[:, H:2 * H])
        n = jnp.tanh(gi[:, 2 * H:3 * H] + r * gh[:, 2 * H:3 * H])
        h_new = (1.0 - z) * n + z * h
        h_scr[...] = h_new
        dec_out_ref[0] = h_new

        # --- maxout: Linear(3H+E -> 2H) then MaxPool1d(2) -----------------------
        # w_m columns are pre-permuted (even | odd) and rows pre-split so no
        # concat / selection matmuls are needed in the kernel.
        tt = (jnp.dot(h, w_m_h_ref[...], preferred_element_type=jnp.float32)
              + jnp.dot(context, w_m_c_ref[...],
                        preferred_element_type=jnp.float32)
              + jnp.dot(emb, w_m_e_ref[...], preferred_element_type=jnp.float32)
              + b_m_ref[...])                                      # (B, 2H) perm
        pooled = jnp.maximum(tt[:, :H], tt[:, H:])                 # (B, H)

        # --- generator: Linear -> log_softmax (argmax done in the wrapper) ------
        logits = jnp.dot(pooled, w_g_ref[...],
                         preferred_element_type=jnp.float32) + b_g_ref[...]  # (B,V)
        m = jnp.max(logits, axis=-1, keepdims=True)
        shifted = logits - m
        logp = shifted - jnp.log(jnp.sum(jnp.exp(shifted), axis=-1,
                                         keepdims=True))
        logp_ref[0] = logp

    return kernel


def bahdanau_decoder_forward(y_ids, src_mask, enc_output, enc_hidden, params):
    """y_ids [B,T] int32, src_mask [B,S], enc_output [B,S,2H], enc_hidden [1,B,H]."""
    B, T = y_ids.shape
    S = enc_output.shape[1]
    H = enc_hidden.shape[-1]
    V, E = params["emb"].shape
    assert enc_hidden.shape[0] == 1  # single-layer GRU only

    enc_output = enc_output.astype(jnp.float32)
    mask = src_mask.astype(jnp.float32)
    enc_hid_last = enc_hidden[-1].astype(jnp.float32)

    # ---- host-side (XLA) precompute: hoisted init + weight re-layout ----------
    # initial hidden and proj_key (were the t==0 cold path inside the kernel)
    h0 = jnp.tanh(enc_hid_last @ params["w_init"] + params["b_init"])   # (B,H)
    proj_key = (jnp.einsum("bsk,kh->bsh", enc_output, params["w_key"])
                + params["b_key"])                                      # (B,S,H)

    # pre-gathered embeddings (teacher forcing), time-major [T,B,E]
    emb_seq = params["emb"][jnp.transpose(y_ids.astype(jnp.int32), (1, 0))]

    # split GRU input weight by concat blocks: [emb | context]
    w_ih_e = params["w_ih"][:E]            # (E, 3H)
    w_ih_c = params["w_ih"][E:]            # (2H, 3H)

    # maxout weight: permute output columns (even | odd) so MaxPool1d(2) becomes
    # max(tt[:, :H], tt[:, H:]); split rows by concat blocks [h | context | emb].
    perm = jnp.concatenate([jnp.arange(0, 2 * H, 2), jnp.arange(1, 2 * H, 2)])
    w_m_p = params["w_m"][:, perm]
    b_m_p = params["b_m"][:, perm]
    w_m_h = w_m_p[:H]                      # (H, 2H)
    w_m_c = w_m_p[H:3 * H]                 # (2H, 2H)
    w_m_e = w_m_p[3 * H:]                  # (E, 2H)

    kernel = _make_decoder_kernel(B, S, T, H, E, V)

    def full_spec(a):
        nd = a.ndim
        return pl.BlockSpec(a.shape, lambda t, _nd=nd: (0,) * _nd)

    invariant_args = [enc_output, proj_key, h0, mask,
                      params["w_q"], params["b_q"], params["w_e"],
                      w_ih_e, w_ih_c, params["w_hh"], params["b_ih"],
                      params["b_hh"],
                      w_m_h, w_m_c, w_m_e, b_m_p,
                      params["w_g"], params["b_g"]]

    in_specs = ([pl.BlockSpec((1, B, E), lambda t: (t, 0, 0))]
                + [full_spec(a) for a in invariant_args])

    out_shapes = (
        jax.ShapeDtypeStruct((T, B, H), jnp.float32),   # dec_outputs (time-major)
        jax.ShapeDtypeStruct((T, B, V), jnp.float32),   # log-probs (time-major)
    )
    out_specs = (
        pl.BlockSpec((1, B, H), lambda t: (t, 0, 0)),
        pl.BlockSpec((1, B, V), lambda t: (t, 0, 0)),
    )

    dec_tm, logp_tm = pl.pallas_call(
        kernel,
        out_shape=out_shapes,
        grid_spec=pltpu.PrefetchScalarGridSpec(
            num_scalar_prefetch=0,
            grid=(T,),
            in_specs=in_specs,
            out_specs=out_specs,
            scratch_shapes=[pltpu.VMEM((B, H), jnp.float32)],   # GRU hidden carry
        ),
        compiler_params=pltpu.CompilerParams(
            dimension_semantics=("arbitrary",),   # recurrence -> sequential grid
            vmem_limit_bytes=64 * 1024 * 1024),
    )(emb_seq, *invariant_args)

    dec_outputs = jnp.transpose(dec_tm, (1, 0, 2))                # [B, T, H]
    final_outputs = jnp.transpose(logp_tm, (1, 0, 2))             # [B, T, V]
    final_predictions = jnp.argmax(final_outputs, axis=-1).astype(jnp.int32)
    return dec_outputs, final_outputs, final_predictions


def init_params(key, H, E, V, pad_token=0):
    ks = jax.random.split(key, 16)
    nrm = lambda k, shape, scale: (scale * jax.random.normal(k, shape)).astype(jnp.float32)
    emb = nrm(ks[0], (V, E), 0.1).at[pad_token].set(0.0)   # padding_idx row = 0
    return dict(
        w_init=nrm(ks[1], (H, H), 0.1), b_init=nrm(ks[2], (1, H), 0.1),
        w_key=nrm(ks[3], (2 * H, H), 0.001), b_key=nrm(ks[4], (1, H), 0.1),
        w_q=nrm(ks[5], (H, H), 0.001), b_q=nrm(ks[6], (1, H), 0.1),
        w_e=nrm(ks[7], (1, H), 0.1),            # energy_layer (H -> 1, no bias)
        emb=emb,
        w_ih=nrm(ks[8], (E + 2 * H, 3 * H), 0.1),
        w_hh=nrm(ks[9], (H, 3 * H), 0.1),
        b_ih=nrm(ks[10], (1, 3 * H), 0.1),
        b_hh=nrm(ks[11], (1, 3 * H), 0.1),
        w_m=nrm(ks[12], (3 * H + E, 2 * H), 0.1),
        b_m=nrm(ks[13], (1, 2 * H), 0.1),
        w_g=nrm(ks[14], (H, V), 0.1),
        b_g=nrm(ks[15], (1, V), 0.1),
    )


def reference_forward(y_ids, src_mask, enc_output, enc_hidden, p):
    """Pure-JAX reference with identical semantics (original weight layout)."""
    B, T = y_ids.shape
    H = enc_hidden.shape[-1]
    h = jnp.tanh(enc_hidden[-1] @ p["w_init"] + p["b_init"])
    pk = jnp.einsum("bsk,kh->bsh", enc_output, p["w_key"]) + p["b_key"]
    mask = src_mask.astype(jnp.float32)
    dec_outs, logps, preds = [], [], []
    for t in range(T):
        emb = p["emb"][y_ids[:, t]]
        proj_q = h @ p["w_q"] + p["b_q"]
        e_pre = jnp.tanh(proj_q[:, None, :] + pk)
        energy = jnp.sum(e_pre * p["w_e"], axis=-1)
        energy = jnp.where(mask == 0.0, -jnp.inf, energy)
        context = jnp.sum(energy[:, :, None] * enc_output, axis=1)
        x = jnp.concatenate([emb, context], axis=-1)
        gi = x @ p["w_ih"] + p["b_ih"]
        gh = h @ p["w_hh"] + p["b_hh"]
        r = jax.nn.sigmoid(gi[:, :H] + gh[:, :H])
        z = jax.nn.sigmoid(gi[:, H:2 * H] + gh[:, H:2 * H])
        n = jnp.tanh(gi[:, 2 * H:] + r * gh[:, 2 * H:])
        h_new = (1.0 - z) * n + z * h
        cat = jnp.concatenate([h, context, emb], axis=-1)
        tt = cat @ p["w_m"] + p["b_m"]
        pooled = jnp.max(tt.reshape(B, H, 2), axis=-1)
        logits = pooled @ p["w_g"] + p["b_g"]
        lp = jax.nn.log_softmax(logits, axis=-1)
        dec_outs.append(h_new[:, None, :])
        logps.append(lp[:, None, :])
        preds.append(jnp.argmax(lp, axis=-1)[:, None])
        h = h_new
    return (jnp.concatenate(dec_outs, axis=1),
            jnp.concatenate(logps, axis=1),
            jnp.concatenate(preds, axis=1).astype(jnp.int32))


if __name__ == "__main__":
    B, S, T, H, E, V = 2, 8, 8, 32, 32, 64
    key = jax.random.PRNGKey(0)
    k_p, k_ids, k_eo, k_eh = jax.random.split(key, 4)
    params = init_params(k_p, H, E, V)

    y_ids = jax.random.randint(k_ids, (B, T), 0, V, dtype=jnp.int32)
    src_mask = jnp.ones((B, S), dtype=jnp.float32)
    enc_output = (0.1 * jax.random.normal(k_eo, (B, S, 2 * H))).astype(jnp.float32)
    enc_hidden = (0.1 * jax.random.normal(k_eh, (1, B, H))).astype(jnp.float32)

    outs = bahdanau_decoder_forward(y_ids, src_mask, enc_output, enc_hidden, params)
    dec_out, final_out, preds = jax.block_until_ready(outs)

    ref_dec, ref_out, ref_pred = reference_forward(y_ids, src_mask, enc_output,
                                                   enc_hidden, params)
    assert jnp.allclose(dec_out, ref_dec, atol=1e-4, rtol=1e-4)
    assert jnp.allclose(final_out, ref_out, atol=1e-4, rtol=1e-4)
    assert jnp.array_equal(preds, ref_pred)
    print("KERNEL_OK")
</pallas_src>

<mosaic_0001>
module attributes {stable_mosaic.version = 11 : i64} {
  func.func @kernel(%arg0: i32, %arg1: memref<1x2x32xf32, #tpu.memory_space<vmem>>, %arg2: memref<2x8x64xf32, #tpu.memory_space<vmem>>, %arg3: memref<2x8x32xf32, #tpu.memory_space<vmem>>, %arg4: memref<2x32xf32, #tpu.memory_space<vmem>>, %arg5: memref<2x8xf32, #tpu.memory_space<vmem>>, %arg6: memref<32x32xf32, #tpu.memory_space<vmem>>, %arg7: memref<1x32xf32, #tpu.memory_space<vmem>>, %arg8: memref<1x32xf32, #tpu.memory_space<vmem>>, %arg9: memref<32x96xf32, #tpu.memory_space<vmem>>, %arg10: memref<64x96xf32, #tpu.memory_space<vmem>>, %arg11: memref<32x96xf32, #tpu.memory_space<vmem>>, %arg12: memref<1x96xf32, #tpu.memory_space<vmem>>, %arg13: memref<1x96xf32, #tpu.memory_space<vmem>>, %arg14: memref<32x64xf32, #tpu.memory_space<vmem>>, %arg15: memref<64x64xf32, #tpu.memory_space<vmem>>, %arg16: memref<32x64xf32, #tpu.memory_space<vmem>>, %arg17: memref<1x64xf32, #tpu.memory_space<vmem>>, %arg18: memref<32x64xf32, #tpu.memory_space<vmem>>, %arg19: memref<1x64xf32, #tpu.memory_space<vmem>>, %arg20: memref<1x2x32xf32, #tpu.memory_space<vmem>>, %arg21: memref<1x2x64xf32, #tpu.memory_space<vmem>>, %arg22: memref<2x32xf32, #tpu.memory_space<vmem>>) attributes {dimension_semantics = [#tpu.dimension_semantics<arbitrary>], iteration_bounds = array<i64: 8>, scalar_prefetch = 0 : i64, scratch_operands = 1 : i64, tpu.core_type = #tpu.core_type<tc>, window_params = [{transform_indices = @transform_0, window_bounds = array<i64: 1, 2, 32>}, {pipeline_mode = #tpu.pipeline_mode<synchronous>, transform_indices = @transform_1, window_bounds = array<i64: 2, 8, 64>}, {pipeline_mode = #tpu.pipeline_mode<synchronous>, transform_indices = @transform_2, window_bounds = array<i64: 2, 8, 32>}, {pipeline_mode = #tpu.pipeline_mode<synchronous>, transform_indices = @transform_3, window_bounds = array<i64: 2, 32>}, {pipeline_mode = #tpu.pipeline_mode<synchronous>, transform_indices = @transform_4, window_bounds = array<i64: 2, 8>}, {pipeline_mode = #tpu.pipeline_mode<synchronous>, transform_indices = @transform_5, window_bounds = array<i64: 32, 32>}, {pipeline_mode = #tpu.pipeline_mode<synchronous>, transform_indices = @transform_6, window_bounds = array<i64: 1, 32>}, {pipeline_mode = #tpu.pipeline_mode<synchronous>, transform_indices = @transform_7, window_bounds = array<i64: 1, 32>}, {pipeline_mode = #tpu.pipeline_mode<synchronous>, transform_indices = @transform_8, window_bounds = array<i64: 32, 96>}, {pipeline_mode = #tpu.pipeline_mode<synchronous>, transform_indices = @transform_9, window_bounds = array<i64: 64, 96>}, {pipeline_mode = #tpu.pipeline_mode<synchronous>, transform_indices = @transform_10, window_bounds = array<i64: 32, 96>}, {pipeline_mode = #tpu.pipeline_mode<synchronous>, transform_indices = @transform_11, window_bounds = array<i64: 1, 96>}, {pipeline_mode = #tpu.pipeline_mode<synchronous>, transform_indices = @transform_12, window_bounds = array<i64: 1, 96>}, {pipeline_mode = #tpu.pipeline_mode<synchronous>, transform_indices = @transform_13, window_bounds = array<i64: 32, 64>}, {pipeline_mode = #tpu.pipeline_mode<synchronous>, transform_indices = @transform_14, window_bounds = array<i64: 64, 64>}, {pipeline_mode = #tpu.pipeline_mode<synchronous>, transform_indices = @transform_15, window_bounds = array<i64: 32, 64>}, {pipeline_mode = #tpu.pipeline_mode<synchronous>, transform_indices = @transform_16, window_bounds = array<i64: 1, 64>}, {pipeline_mode = #tpu.pipeline_mode<synchronous>, transform_indices = @transform_17, window_bounds = array<i64: 32, 64>}, {pipeline_mode = #tpu.pipeline_mode<synchronous>, transform_indices = @transform_18, window_bounds = array<i64: 1, 64>}, {transform_indices = @transform_19, window_bounds = array<i64: 1, 2, 32>}, {transform_indices = @transform_20, window_bounds = array<i64: 1, 2, 64>}]} {
    %c0_i32 = arith.constant 0 : i32
    %0 = arith.cmpi eq, %arg0, %c0_i32 : i32
    %1 = arith.extui %0 : i1 to i32
    %c0_i32_0 = arith.constant 0 : i32
    %2 = arith.cmpi ne, %1, %c0_i32_0 : i32
    scf.if %2 {
      %c0_65 = arith.constant 0 : index
      %c0_66 = arith.constant 0 : index
      %105 = vector.load %arg4[%c0_65, %c0_66] : memref<2x32xf32, #tpu.memory_space<vmem>>, vector<2x32xf32>
      %c0_67 = arith.constant 0 : index
      %c0_68 = arith.constant 0 : index
      %106 = vector.load %arg22[%c0_67, %c0_68] : memref<2x32xf32, #tpu.memory_space<vmem>>, vector<2x32xf32>
      tpu.vector_store %arg22[%c0_67, %c0_68], %105 {strides = array<i32>} : memref<2x32xf32, #tpu.memory_space<vmem>>, vector<2x32xf32>,
    } else {
    }
    %c0 = arith.constant 0 : index
    %c0_1 = arith.constant 0 : index
    %c0_2 = arith.constant 0 : index
    %3 = vector.load %arg1[%c0, %c0_1, %c0_2] : memref<1x2x32xf32, #tpu.memory_space<vmem>>, vector<1x2x32xf32>
    %4 = vector.shape_cast %3 : vector<1x2x32xf32> to vector<2x32xf32>
    %c0_3 = arith.constant 0 : index
    %c0_4 = arith.constant 0 : index
    %5 = vector.load %arg22[%c0_3, %c0_4] : memref<2x32xf32, #tpu.memory_space<vmem>>, vector<2x32xf32>
    %c0_5 = arith.constant 0 : index
    %c0_6 = arith.constant 0 : index
    %6 = vector.load %arg6[%c0_5, %c0_6] : memref<32x32xf32, #tpu.memory_space<vmem>>, vector<32x32xf32>
    %cst = arith.constant dense<0.000000e+00> : vector<2x32xf32>
    %7 = tpu.matmul %5, %6, %cst {dimension_numbers = #tpu.dot_dimension_numbers<[1], [0], [0], [1], [0, 0, 1, 1], [], []>} : vector<2x32xf32>, vector<32x32xf32>, vector<2x32xf32> -> vector<2x32xf32>
    %c0_7 = arith.constant 0 : index
    %c0_8 = arith.constant 0 : index
    %8 = vector.load %arg7[%c0_7, %c0_8] : memref<1x32xf32, #tpu.memory_space<vmem>>, vector<1x32xf32>
    %9 = vector.broadcast %8 : vector<1x32xf32> to vector<2x32xf32>
    %10 = arith.addf %7, %9 : vector<2x32xf32>
    %11 = vector.shape_cast %10 : vector<2x32xf32> to vector<2x1x32xf32>
    %c0_9 = arith.constant 0 : index
    %c0_10 = arith.constant 0 : index
    %c0_11 = arith.constant 0 : index
    %12 = vector.load %arg3[%c0_9, %c0_10, %c0_11] : memref<2x8x32xf32, #tpu.memory_space<vmem>>, vector<2x8x32xf32>
    %13 = vector.broadcast %11 : vector<2x1x32xf32> to vector<2x8x32xf32>
    %14 = arith.addf %13, %12 : vector<2x8x32xf32>
    %15 = math.tanh %14 : vector<2x8x32xf32>
    %c0_12 = arith.constant 0 : index
    %c0_13 = arith.constant 0 : index
    %16 = vector.load %arg8[%c0_12, %c0_13] : memref<1x32xf32, #tpu.memory_space<vmem>>, vector<1x32xf32>
    %17 = vector.shape_cast %16 : vector<1x32xf32> to vector<1x1x32xf32>
    %18 = vector.broadcast %17 : vector<1x1x32xf32> to vector<2x8x32xf32>
    %19 = arith.mulf %15, %18 : vector<2x8x32xf32>
    %cst_14 = arith.constant dense<0.000000e+00> : vector<2x8xf32>
    %20 = vector.multi_reduction <add>, %19, %cst_14 [2] : vector<2x8x32xf32> to vector<2x8xf32>
    %c0_15 = arith.constant 0 : index
    %c0_16 = arith.constant 0 : index
    %21 = vector.load %arg5[%c0_15, %c0_16] : memref<2x8xf32, #tpu.memory_space<vmem>>, vector<2x8xf32>
    %cst_17 = arith.constant 0.000000e+00 : f32
    %22 = vector.broadcast %cst_17 : f32 to vector<2x8xf32>
    %23 = arith.cmpf oeq, %21, %22 : vector<2x8xf32>
    %cst_18 = arith.constant 0xFF800000 : f32
    %24 = vector.broadcast %cst_18 : f32 to vector<2x8xf32>
    %25 = arith.select %23, %24, %20 : vector<2x8xi1>, vector<2x8xf32>
    %26 = vector.shape_cast %25 : vector<2x8xf32> to vector<2x1x8xf32>
    %c0_19 = arith.constant 0 : index
    %c0_20 = arith.constant 0 : index
    %c0_21 = arith.constant 0 : index
    %27 = vector.load %arg2[%c0_19, %c0_20, %c0_21] : memref<2x8x64xf32, #tpu.memory_space<vmem>>, vector<2x8x64xf32>
    "tpu.trace_start"() <{level = 10 : i32, message = "bqs,bsk->bqk"}> : () -> ()
    %cst_22 = arith.constant dense<0.000000e+00> : vector<2x1x64xf32>
    %28 = tpu.matmul %26, %27, %cst_22 {dimension_numbers = #tpu.dot_dimension_numbers<[2], [1], [1], [2], [0, 0, 0, 1, 1, 2], [0], [0]>} : vector<2x1x8xf32>, vector<2x8x64xf32>, vector<2x1x64xf32> -> vector<2x1x64xf32>
    "tpu.trace_stop"() : () -> ()
    %29 = vector.shape_cast %28 : vector<2x1x64xf32> to vector<2x64xf32>
    %c0_23 = arith.constant 0 : index
    %c0_24 = arith.constant 0 : index
    %30 = vector.load %arg9[%c0_23, %c0_24] : memref<32x96xf32, #tpu.memory_space<vmem>>, vector<32x96xf32>
    %cst_25 = arith.constant dense<0.000000e+00> : vector<2x96xf32>
    %31 = tpu.matmul %4, %30, %cst_25 {dimension_numbers = #tpu.dot_dimension_numbers<[1], [0], [0], [1], [0, 0, 1, 1], [], []>} : vector<2x32xf32>, vector<32x96xf32>, vector<2x96xf32> -> vector<2x96xf32>
    %c0_26 = arith.constant 0 : index
    %c0_27 = arith.constant 0 : index
    %32 = vector.load %arg10[%c0_26, %c0_27] : memref<64x96xf32, #tpu.memory_space<vmem>>, vector<64x96xf32>
    %cst_28 = arith.constant dense<0.000000e+00> : vector<2x96xf32>
    %33 = tpu.matmul %29, %32, %cst_28 {dimension_numbers = #tpu.dot_dimension_numbers<[1], [0], [0], [1], [0, 0, 1, 1], [], []>} : vector<2x64xf32>, vector<64x96xf32>, vector<2x96xf32> -> vector<2x96xf32>
    %34 = arith.addf %31, %33 : vector<2x96xf32>
    %c0_29 = arith.constant 0 : index
    %c0_30 = arith.constant 0 : index
    %35 = vector.load %arg12[%c0_29, %c0_30] : memref<1x96xf32, #tpu.memory_space<vmem>>, vector<1x96xf32>
    %36 = vector.broadcast %35 : vector<1x96xf32> to vector<2x96xf32>
    %37 = arith.addf %34, %36 : vector<2x96xf32>
    %c0_31 = arith.constant 0 : index
    %c0_32 = arith.constant 0 : index
    %38 = vector.load %arg11[%c0_31, %c0_32] : memref<32x96xf32, #tpu.memory_space<vmem>>, vector<32x96xf32>
    %cst_33 = arith.constant dense<0.000000e+00> : vector<2x96xf32>
    %39 = tpu.matmul %5, %38, %cst_33 {dimension_numbers = #tpu.dot_dimension_numbers<[1], [0], [0], [1], [0, 0, 1, 1], [], []>} : vector<2x32xf32>, vector<32x96xf32>, vector<2x96xf32> -> vector<2x96xf32>
    %c0_34 = arith.constant 0 : index
    %c0_35 = arith.constant 0 : index
    %40 = vector.load %arg13[%c0_34, %c0_35] : memref<1x96xf32, #tpu.memory_space<vmem>>, vector<1x96xf32>
    %41 = vector.broadcast %40 : vector<1x96xf32> to vector<2x96xf32>
    %42 = arith.addf %39, %41 : vector<2x96xf32>
    %43 = vector.extract_strided_slice %37 {offsets = [0, 0], sizes = [2, 32], strides = [1, 1]} : vector<2x96xf32> to vector<2x32xf32>
    %44 = vector.extract_strided_slice %42 {offsets = [0, 0], sizes = [2, 32], strides = [1, 1]} : vector<2x96xf32> to vector<2x32xf32>
    %45 = arith.addf %43, %44 : vector<2x32xf32>
    %46 = arith.negf %45 : vector<2x32xf32>
    %47 = math.exp %46 : vector<2x32xf32>
    %cst_36 = arith.constant 1.000000e+00 : f32
    %48 = vector.broadcast %cst_36 : f32 to vector<2x32xf32>
    %49 = arith.addf %48, %47 : vector<2x32xf32>
    %50 = arith.divf %48, %49 : vector<2x32xf32>
    %51 = vector.extract_strided_slice %37 {offsets = [0, 32], sizes = [2, 32], strides = [1, 1]} : vector<2x96xf32> to vector<2x32xf32>
    %52 = vector.extract_strided_slice %42 {offsets = [0, 32], sizes = [2, 32], strides = [1, 1]} : vector<2x96xf32> to vector<2x32xf32>
    %53 = arith.addf %51, %52 : vector<2x32xf32>
    %54 = arith.negf %53 : vector<2x32xf32>
    %55 = math.exp %54 : vector<2x32xf32>
    %cst_37 = arith.constant 1.000000e+00 : f32
    %56 = vector.broadcast %cst_37 : f32 to vector<2x32xf32>
    %57 = arith.addf %56, %55 : vector<2x32xf32>
    %58 = arith.divf %56, %57 : vector<2x32xf32>
    %59 = vector.extract_strided_slice %37 {offsets = [0, 64], sizes = [2, 32], strides = [1, 1]} : vector<2x96xf32> to vector<2x32xf32>
    %60 = vector.extract_strided_slice %42 {offsets = [0, 64], sizes = [2, 32], strides = [1, 1]} : vector<2x96xf32> to vector<2x32xf32>
    %61 = arith.mulf %50, %60 : vector<2x32xf32>
    %62 = arith.addf %59, %61 : vector<2x32xf32>
    %63 = math.tanh %62 : vector<2x32xf32>
    %cst_38 = arith.constant 1.000000e+00 : f32
    %64 = vector.broadcast %cst_38 : f32 to vector<2x32xf32>
    %65 = arith.subf %64, %58 : vector<2x32xf32>
    %66 = arith.mulf %65, %63 : vector<2x32xf32>
    %67 = arith.mulf %58, %5 : vector<2x32xf32>
    %68 = arith.addf %66, %67 : vector<2x32xf32>
    %c0_39 = arith.constant 0 : index
    %c0_40 = arith.constant 0 : index
    %69 = vector.load %arg22[%c0_39, %c0_40] : memref<2x32xf32, #tpu.memory_space<vmem>>, vector<2x32xf32>
    tpu.vector_store %arg22[%c0_39, %c0_40], %68 {strides = array<i32>} : memref<2x32xf32, #tpu.memory_space<vmem>>, vector<2x32xf32>,
    %c0_41 = arith.constant 0 : index
    %c0_42 = arith.constant 0 : index
    %c0_43 = arith.constant 0 : index
    %70 = vector.load %arg20[%c0_41, %c0_42, %c0_43] : memref<1x2x32xf32, #tpu.memory_space<vmem>>, vector<1x2x32xf32>
    %71 = vector.shape_cast %70 : vector<1x2x32xf32> to vector<2x32xf32>
    %72 = vector.shape_cast %68 : vector<2x32xf32> to vector<1x2x32xf32>
    tpu.vector_store %arg20[%c0_41, %c0_42, %c0_43], %72 {strides = array<i32>} : memref<1x2x32xf32, #tpu.memory_space<vmem>>, vector<1x2x32xf32>,
    %c0_44 = arith.constant 0 : index
    %c0_45 = arith.constant 0 : index
    %73 = vector.load %arg14[%c0_44, %c0_45] : memref<32x64xf32, #tpu.memory_space<vmem>>, vector<32x64xf32>
    %cst_46 = arith.constant dense<0.000000e+00> : vector<2x64xf32>
    %74 = tpu.matmul %5, %73, %cst_46 {dimension_numbers = #tpu.dot_dimension_numbers<[1], [0], [0], [1], [0, 0, 1, 1], [], []>} : vector<2x32xf32>, vector<32x64xf32>, vector<2x64xf32> -> vector<2x64xf32>
    %c0_47 = arith.constant 0 : index
    %c0_48 = arith.constant 0 : index
    %75 = vector.load %arg15[%c0_47, %c0_48] : memref<64x64xf32, #tpu.memory_space<vmem>>, vector<64x64xf32>
    %cst_49 = arith.constant dense<0.000000e+00> : vector<2x64xf32>
    %76 = tpu.matmul %29, %75, %cst_49 {dimension_numbers = #tpu.dot_dimension_numbers<[1], [0], [0], [1], [0, 0, 1, 1], [], []>} : vector<2x64xf32>, vector<64x64xf32>, vector<2x64xf32> -> vector<2x64xf32>
    %77 = arith.addf %74, %76 : vector<2x64xf32>
    %c0_50 = arith.constant 0 : index
    %c0_51 = arith.constant 0 : index
    %78 = vector.load %arg16[%c0_50, %c0_51] : memref<32x64xf32, #tpu.memory_space<vmem>>, vector<32x64xf32>
    %cst_52 = arith.constant dense<0.000000e+00> : vector<2x64xf32>
    %79 = tpu.matmul %4, %78, %cst_52 {dimension_numbers = #tpu.dot_dimension_numbers<[1], [0], [0], [1], [0, 0, 1, 1], [], []>} : vector<2x32xf32>, vector<32x64xf32>, vector<2x64xf32> -> vector<2x64xf32>
    %80 = arith.addf %77, %79 : vector<2x64xf32>
    %c0_53 = arith.constant 0 : index
    %c0_54 = arith.constant 0 : index
    %81 = vector.load %arg17[%c0_53, %c0_54] : memref<1x64xf32, #tpu.memory_space<vmem>>, vector<1x64xf32>
    %82 = vector.broadcast %81 : vector<1x64xf32> to vector<2x64xf32>
    %83 = arith.addf %80, %82 : vector<2x64xf32>
    %84 = vector.extract_strided_slice %83 {offsets = [0, 0], sizes = [2, 32], strides = [1, 1]} : vector<2x64xf32> to vector<2x32xf32>
    %85 = vector.extract_strided_slice %83 {offsets = [0, 32], sizes = [2, 32], strides = [1, 1]} : vector<2x64xf32> to vector<2x32xf32>
    %86 = arith.maximumf %84, %85 : vector<2x32xf32>
    %c0_55 = arith.constant 0 : index
    %c0_56 = arith.constant 0 : index
    %87 = vector.load %arg18[%c0_55, %c0_56] : memref<32x64xf32, #tpu.memory_space<vmem>>, vector<32x64xf32>
    %cst_57 = arith.constant dense<0.000000e+00> : vector<2x64xf32>
    %88 = tpu.matmul %86, %87, %cst_57 {dimension_numbers = #tpu.dot_dimension_numbers<[1], [0], [0], [1], [0, 0, 1, 1], [], []>} : vector<2x32xf32>, vector<32x64xf32>, vector<2x64xf32> -> vector<2x64xf32>
    %c0_58 = arith.constant 0 : index
    %c0_59 = arith.constant 0 : index
    %89 = vector.load %arg19[%c0_58, %c0_59] : memref<1x64xf32, #tpu.memory_space<vmem>>, vector<1x64xf32>
    %90 = vector.broadcast %89 : vector<1x64xf32> to vector<2x64xf32>
    %91 = arith.addf %88, %90 : vector<2x64xf32>
    %cst_60 = arith.constant dense<0xFF800000> : vector<2xf32>
    %92 = vector.multi_reduction <maximumf>, %91, %cst_60 [1] : vector<2x64xf32> to vector<2xf32>
    %93 = vector.shape_cast %92 : vector<2xf32> to vector<2x1xf32>
    %94 = vector.broadcast %93 : vector<2x1xf32> to vector<2x64xf32>
    %95 = arith.subf %91, %94 : vector<2x64xf32>
    %96 = math.exp %95 : vector<2x64xf32>
    %cst_61 = arith.constant dense<0.000000e+00> : vector<2xf32>
    %97 = vector.multi_reduction <add>, %96, %cst_61 [1] : vector<2x64xf32> to vector<2xf32>
    %98 = vector.shape_cast %97 : vector<2xf32> to vector<2x1xf32>
    %99 = math.log %98 : vector<2x1xf32>
    %100 = vector.broadcast %99 : vector<2x1xf32> to vector<2x64xf32>
    %101 = arith.subf %95, %100 : vector<2x64xf32>
    %c0_62 = arith.constant 0 : index
    %c0_63 = arith.constant 0 : index
    %c0_64 = arith.constant 0 : index
    %102 = vector.load %arg21[%c0_62, %c0_63, %c0_64] : memref<1x2x64xf32, #tpu.memory_space<vmem>>, vector<1x2x64xf32>
    %103 = vector.shape_cast %102 : vector<1x2x64xf32> to vector<2x64xf32>
    %104 = vector.shape_cast %101 : vector<2x64xf32> to vector<1x2x64xf32>
    tpu.vector_store %arg21[%c0_62, %c0_63, %c0_64], %104 {strides = array<i32>} : memref<1x2x64xf32, #tpu.memory_space<vmem>>, vector<1x2x64xf32>,
    return
  }
  func.func @transform_0(%arg0: i32) -> (i32, i32, i32) {
    %c0_i32 = arith.constant 0 : i32
    %c0_i32_0 = arith.constant 0 : i32
    %c0_i32_1 = arith.constant 0 : i32
    return %arg0, %c0_i32, %c0_i32_0 : i32, i32, i32
  }
  func.func @transform_1(%arg0: i32) -> (i32, i32, i32) {
    %c0_i32 = arith.constant 0 : i32
    %c0_i32_0 = arith.constant 0 : i32
    %c0_i32_1 = arith.constant 0 : i32
    %c0_i32_2 = arith.constant 0 : i32
    return %c0_i32, %c0_i32_0, %c0_i32_1 : i32, i32, i32
  }
  func.func @transform_2(%arg0: i32) -> (i32, i32, i32) {
    %c0_i32 = arith.constant 0 : i32
    %c0_i32_0 = arith.constant 0 : i32
    %c0_i32_1 = arith.constant 0 : i32
    %c0_i32_2 = arith.constant 0 : i32
    return %c0_i32, %c0_i32_0, %c0_i32_1 : i32, i32, i32
  }
  func.func @transform_3(%arg0: i32) -> (i32, i32) {
    %c0_i32 = arith.constant 0 : i32
    %c0_i32_0 = arith.constant 0 : i32
    %c0_i32_1 = arith.constant 0 : i32
    return %c0_i32, %c0_i32_0 : i32, i32
  }
  func.func @transform_4(%arg0: i32) -> (i32, i32) {
    %c0_i32 = arith.constant 0 : i32
    %c0_i32_0 = arith.constant 0 : i32
    %c0_i32_1 = arith.constant 0 : i32
    return %c0_i32, %c0_i32_0 : i32, i32
  }
  func.func @transform_5(%arg0: i32) -> (i32, i32) {
    %c0_i32 = arith.constant 0 : i32
    %c0_i32_0 = arith.constant 0 : i32
    %c0_i32_1 = arith.constant 0 : i32
    return %c0_i32, %c0_i32_0 : i32, i32
  }
  func.func @transform_6(%arg0: i32) -> (i32, i32) {
    %c0_i32 = arith.constant 0 : i32
    %c0_i32_0 = arith.constant 0 : i32
    %c0_i32_1 = arith.constant 0 : i32
    return %c0_i32, %c0_i32_0 : i32, i32
  }
  func.func @transform_7(%arg0: i32) -> (i32, i32) {
    %c0_i32 = arith.constant 0 : i32
    %c0_i32_0 = arith.constant 0 : i32
    %c0_i32_1 = arith.constant 0 : i32
    return %c0_i32, %c0_i32_0 : i32, i32
  }
  func.func @transform_8(%arg0: i32) -> (i32, i32) {
    %c0_i32 = arith.constant 0 : i32
    %c0_i32_0 = arith.constant 0 : i32
    %c0_i32_1 = arith.constant 0 : i32
    return %c0_i32, %c0_i32_0 : i32, i32
  }
  func.func @transform_9(%arg0: i32) -> (i32, i32) {
    %c0_i32 = arith.constant 0 : i32
    %c0_i32_0 = arith.constant 0 : i32
    %c0_i32_1 = arith.constant 0 : i32
    return %c0_i32, %c0_i32_0 : i32, i32
  }
  func.func @transform_10(%arg0: i32) -> (i32, i32) {
    %c0_i32 = arith.constant 0 : i32
    %c0_i32_0 = arith.constant 0 : i32
    %c0_i32_1 = arith.constant 0 : i32
    return %c0_i32, %c0_i32_0 : i32, i32
  }
  func.func @transform_11(%arg0: i32) -> (i32, i32) {
    %c0_i32 = arith.constant 0 : i32
    %c0_i32_0 = arith.constant 0 : i32
    %c0_i32_1 = arith.constant 0 : i32
    return %c0_i32, %c0_i32_0 : i32, i32
  }
  func.func @transform_12(%arg0: i32) -> (i32, i32) {
    %c0_i32 = arith.constant 0 : i32
    %c0_i32_0 = arith.constant 0 : i32
    %c0_i32_1 = arith.constant 0 : i32
    return %c0_i32, %c0_i32_0 : i32, i32
  }
  func.func @transform_13(%arg0: i32) -> (i32, i32) {
    %c0_i32 = arith.constant 0 : i32
    %c0_i32_0 = arith.constant 0 : i32
    %c0_i32_1 = arith.constant 0 : i32
    return %c0_i32, %c0_i32_0 : i32, i32
  }
  func.func @transform_14(%arg0: i32) -> (i32, i32) {
    %c0_i32 = arith.constant 0 : i32
    %c0_i32_0 = arith.constant 0 : i32
    %c0_i32_1 = arith.constant 0 : i32
    return %c0_i32, %c0_i32_0 : i32, i32
  }
  func.func @transform_15(%arg0: i32) -> (i32, i32) {
    %c0_i32 = arith.constant 0 : i32
    %c0_i32_0 = arith.constant 0 : i32
    %c0_i32_1 = arith.constant 0 : i32
    return %c0_i32, %c0_i32_0 : i32, i32
  }
  func.func @transform_16(%arg0: i32) -> (i32, i32) {
    %c0_i32 = arith.constant 0 : i32
    %c0_i32_0 = arith.constant 0 : i32
    %c0_i32_1 = arith.constant 0 : i32
    return %c0_i32, %c0_i32_0 : i32, i32
  }
  func.func @transform_17(%arg0: i32) -> (i32, i32) {
    %c0_i32 = arith.constant 0 : i32
    %c0_i32_0 = arith.constant 0 : i32
    %c0_i32_1 = arith.constant 0 : i32
    return %c0_i32, %c0_i32_0 : i32, i32
  }
  func.func @transform_18(%arg0: i32) -> (i32, i32) {
    %c0_i32 = arith.constant 0 : i32
    %c0_i32_0 = arith.constant 0 : i32
    %c0_i32_1 = arith.constant 0 : i32
    return %c0_i32, %c0_i32_0 : i32, i32
  }
  func.func @transform_19(%arg0: i32) -> (i32, i32, i32) {
    %c0_i32 = arith.constant 0 : i32
    %c0_i32_0 = arith.constant 0 : i32
    %c0_i32_1 = arith.constant 0 : i32
    return %arg0, %c0_i32, %c0_i32_0 : i32, i32, i32
  }
  func.func @transform_20(%arg0: i32) -> (i32, i32, i32) {
    %c0_i32 = arith.constant 0 : i32
    %c0_i32_0 = arith.constant 0 : i32
    %c0_i32_1 = arith.constant 0 : i32
    return %arg0, %c0_i32, %c0_i32_0 : i32, i32, i32
  }
}

</mosaic_0001>

<llo_original>
// kernel: tpu_custom_call.1
$region0: #{tpu_custom_call.1}
  #allocation0 [shape = 'u32[]', space=smem, size = 0x4, offset = 0x4, fixed_abs, tag = 'smem constant byte address 0x4 - core index']
  #allocation1 [shape = 'u32[144,128]{1,0:T(1,128)}', space=vmem, size = 0x12000, scoped, tag = 'internal scratch']
  #allocation2 [shape = 'f32[2,32]{1,0:T(2,128)}', space=vmem, size = 0x400, scoped, tag = 'scratch operand']
  %s0 = inlined_call_operand.hbm [shape: f32[8,2,32], index: 0, kind: input, shape index: {}]
  %s1 = inlined_call_operand.hbm [shape: f32[2,8,64], index: 1, kind: input, shape index: {}]
  %s2 = inlined_call_operand.hbm [shape: f32[2,8,32], index: 2, kind: input, shape index: {}]
  %s3 = inlined_call_operand.vmem [shape: f32[2,32], index: 3, kind: input, shape index: {}]
  %s4 = inlined_call_operand.vmem [shape: f32[2,8], index: 4, kind: input, shape index: {}]
  %s5 = inlined_call_operand.hbm [shape: f32[32,32], index: 5, kind: input, shape index: {}]
  %s6 = inlined_call_operand.vmem [shape: f32[1,32], index: 6, kind: input, shape index: {}]
  %s7 = inlined_call_operand.vmem [shape: f32[1,32], index: 7, kind: input, shape index: {}]
  %s8 = inlined_call_operand.hbm [shape: f32[32,96], index: 8, kind: input, shape index: {}]
  %s9 = inlined_call_operand.hbm [shape: f32[64,96], index: 9, kind: input, shape index: {}]
  %s10 = inlined_call_operand.hbm [shape: f32[32,96], index: 10, kind: input, shape index: {}]
  %s11 = inlined_call_operand.vmem [shape: f32[1,96], index: 11, kind: input, shape index: {}]
  %s12 = inlined_call_operand.vmem [shape: f32[1,96], index: 12, kind: input, shape index: {}]
  %s13 = inlined_call_operand.hbm [shape: f32[32,64], index: 13, kind: input, shape index: {}]
  %s14 = inlined_call_operand.hbm [shape: f32[64,64], index: 14, kind: input, shape index: {}]
  %s15 = inlined_call_operand.hbm [shape: f32[32,64], index: 15, kind: input, shape index: {}]
  %s16 = inlined_call_operand.vmem [shape: f32[1,64], index: 16, kind: input, shape index: {}]
  %s17 = inlined_call_operand.hbm [shape: f32[32,64], index: 17, kind: input, shape index: {}]
  %s18 = inlined_call_operand.vmem [shape: f32[1,64], index: 18, kind: input, shape index: {}]
  %s19 = inlined_call_operand.hbm [shape: f32[8,2,32], index: 19, kind: output, shape index: {0}]
  %s20 = inlined_call_operand.hbm [shape: f32[8,2,64], index: 20, kind: output, shape index: {1}]
  %21 = xla_tuple %s19, %s20
  %s22 = sld [smem:[#allocation0]]
  $region165: #{tpu_custom_call.1} parent=0
    _
  %s24 = ssub.s32 1, %s22
  %s25 = scalar_select 0, %s24, %s22
  $region1: #{tpu_custom_call.1} parent=0
    #allocation3 [shape = 'u8[2048]{0}', space=vmem, size = 0x800, scoped, tag = 'input window, operand 0']
    #allocation4 [shape = 's32[2]{0}', space=sflag, size = 0x8, scoped, tag = 'scoped memory for tpu_custom_call.1']
    #allocation5 [shape = 's32[2]{0}', space=sflag, size = 0x8, scoped, tag = 'scoped memory for tpu_custom_call.1']
    #allocation6 [shape = 'u8[8192]{0}', space=vmem, size = 0x2000, scoped, tag = 'input window, operand 1, single buffered']
    #allocation7 [shape = 's32[1]{0}', space=sflag, size = 0x4, scoped, tag = 'scoped memory for tpu_custom_call.1']
    #allocation8 [shape = 'u8[8192]{0}', space=vmem, size = 0x2000, scoped, tag = 'input window, operand 2, single buffered']
    #allocation9 [shape = 'u8[16384]{0}', space=vmem, size = 0x4000, scoped, tag = 'input window, operand 5, single buffered']
    #allocation10 [shape = 's32[1]{0}', space=sflag, size = 0x4, scoped, tag = 'scoped memory for tpu_custom_call.1']
    #allocation11 [shape = 'u8[16384]{0}', space=vmem, size = 0x4000, scoped, tag = 'input window, operand 8, single buffered']
    #allocation12 [shape = 'u8[32768]{0}', space=vmem, size = 0x8000, scoped, tag = 'input window, operand 9, single buffered']
    #allocation13 [shape = 's32[1]{0}', space=sflag, size = 0x4, scoped, tag = 'scoped memory for tpu_custom_call.1']
    #allocation14 [shape = 'u8[16384]{0}', space=vmem, size = 0x4000, scoped, tag = 'input window, operand 10, single buffered']
    #allocation15 [shape = 'u8[16384]{0}', space=vmem, size = 0x4000, scoped, tag = 'input window, operand 13, single buffered']
    #allocation16 [shape = 's32[1]{0}', space=sflag, size = 0x4, scoped, tag = 'scoped memory for tpu_custom_call.1']
    #allocation17 [shape = 'u8[32768]{0}', space=vmem, size = 0x8000, scoped, tag = 'input window, operand 14, single buffered']
    #allocation18 [shape = 'u8[16384]{0}', space=vmem, size = 0x4000, scoped, tag = 'input window, operand 15, single buffered']
    #allocation19 [shape = 's32[1]{0}', space=sflag, size = 0x4, scoped, tag = 'scoped memory for tpu_custom_call.1']
    #allocation20 [shape = 'u8[16384]{0}', space=vmem, size = 0x4000, scoped, tag = 'input window, operand 17, single buffered']
    #allocation21 [shape = 'u8[2048]{0}', space=vmem, size = 0x800, scoped, tag = 'output window, operand 0']
    #allocation22 [shape = 'u8[2048]{0}', space=vmem, size = 0x800, scoped, tag = 'output window, operand 1']
    #allocation23 [shape = 's32[2]{0}', space=sflag, size = 0x8, scoped, tag = 'scoped memory for tpu_custom_call.1']
    %26 = vsyncpa [#allocation4], 0
    %s27 = scalar_lea.sflag [#allocation4], 1
    %28 = vsyncpa %s27, 0
    %29 = vsyncpa [#allocation7], 0
    %30 = vsyncpa [#allocation10], 0
    %31 = vsyncpa [#allocation13], 0
    %32 = vsyncpa [#allocation16], 0
    %33 = vsyncpa [#allocation19], 0
    %34 = vsyncpa [#allocation5], 0
    %s35 = scalar_lea.sflag [#allocation5], 1
    %36 = vsyncpa %s35, 0
    %37 = vsyncpa [#allocation23], 0
    %s38 = scalar_lea.sflag [#allocation23], 1
    %39 = vsyncpa %s38, 0
    loop: start=0, step=1, limit=10
    $region2: #{tpu_custom_call.1} parent=1 // loop_pre_header
      _
    $region3: #{tpu_custom_call.1} parent=1 // loop_header
      %s41 = sphi 0, %s45
      %p42 = scmp.ge.s32.totalorder %s41, 10
      %s51 = sphi 0, %s53
      %s54 = sphi 0, %s51
      %s55 = sphi 0, %s54
      %s71 = sphi 0, %s55
      %s75 = sphi 0, %s75
      %s77 = sphi 0, %s75
      %s78 = sphi 0, %s77
      %s92 = sphi 0, %s78
      %s96 = sphi 0, %s96
      %s98 = sphi 0, %s96
      %s99 = sphi 0, %s98
      %s113 = sphi 0, %s99
      %s117 = sphi 0, %s117
      %s119 = sphi 0, %s117
      %s120 = sphi 0, %s119
      %s134 = sphi 0, %s120
      %s138 = sphi 0, %s138
      %s140 = sphi 0, %s138
      %s141 = sphi 0, %s140
      %s155 = sphi 0, %s141
      %s159 = sphi 0, %s159
      %s161 = sphi 0, %s159
      %s162 = sphi 0, %s161
      %s176 = sphi 0, %s162
      %s180 = sphi 0, %s180
      %s182 = sphi 0, %s180
      %s183 = sphi 0, %s182
      %s197 = sphi 0, %s183
      %s201 = sphi 0, %s201
      %s203 = sphi 0, %s201
      %s204 = sphi 0, %s203
      %s218 = sphi 0, %s204
      %s222 = sphi 0, %s222
      %s224 = sphi 0, %s222
      %s225 = sphi 0, %s224
      %s239 = sphi 0, %s225
      %s243 = sphi 0, %s243
      %s245 = sphi 0, %s243
      %s246 = sphi 0, %s245
      %s260 = sphi 0, %s246
      %s264 = sphi 0, %s264
      %s266 = sphi 0, %s264
      %s267 = sphi 0, %s266
      %s281 = sphi 0, %s267
      %s285 = sphi 0, %s285
      %s287 = sphi 0, %s285
      %s288 = sphi 0, %s287
      %s302 = sphi 0, %s288
      %s306 = sphi 0, %s306
      %s308 = sphi 0, %s306
      %s309 = sphi 0, %s308
      %s323 = sphi 0, %s309
      %s327 = sphi 0, %s327
      %s329 = sphi 0, %s327
      %s330 = sphi 0, %s329
      %s344 = sphi 0, %s330
      %s348 = sphi 0, %s348
      %s350 = sphi 0, %s348
      %s351 = sphi 0, %s350
      %s365 = sphi 0, %s351
      %s369 = sphi 0, %s369
      %s371 = sphi 0, %s369
      %s372 = sphi 0, %s371
      %s386 = sphi 0, %s372
      %s390 = sphi 0, %s390
      %s392 = sphi 0, %s390
      %s393 = sphi 0, %s392
      %s407 = sphi 0, %s393
      %s411 = sphi 0, %s411
      %s413 = sphi 0, %s411
      %s414 = sphi 0, %s413
      %s428 = sphi 0, %s414
      %s432 = sphi 0, %s432
      %s434 = sphi 0, %s432
      %s435 = sphi 0, %s434
      %s449 = sphi 0, %s435
      %s455 = sphi 0, %s457
      %s458 = sphi 0, %s455
      %s459 = sphi 0, %s458
      %s475 = sphi 0, %s459
      %s481 = sphi 0, %s483
      %s484 = sphi 0, %s481
      %s485 = sphi 0, %s484
      %s501 = sphi 0, %s485
    $region4: #{tpu_custom_call.1} parent=1 // loop_header_branch
      %44 = sbr.rel (%p42) target = $region8
    $region5: #{tpu_custom_call.1} parent=1 // loop_body
      %s46 = ssub.s32 %s41, 1
      %s47 = ssub.s32 %s41, 2
      %s48 = sadd.s32 %s41, 1
      %s49 = ssub.s32 %s41, %s48
      %p50 = scmp.eq.s32.totalorder %s49, 0
      %s52 = sadd.s32 %s51, 1
      %s53 = scalar_select %p50, %s51, %s52
      %p56 = pneg %p50
      %p57 = scmp.eq.s32.totalorder %s41, 7
      %p58 = por %p56, %p57
      %p59 = scmp.ne.s32.totalorder %s51, %s54
      %p60 = scmp.eq.s32.totalorder %s41, 0
      %p61 = por %p59, %p60
      %p62 = scmp.ne.s32.totalorder %s51, %s54
      %p63 = scmp.eq.s32.totalorder %s46, 7
      %p64 = por %p62, %p63
      %p65 = scmp.ne.s32.totalorder %s54, %s55
      %p66 = scmp.eq.s32.totalorder %s46, 0
      %p67 = por %p65, %p66
      %p68 = scmp.ne.s32.totalorder %s54, %s55
      %p69 = scmp.eq.s32.totalorder %s47, 7
      %p70 = por %p68, %p69
      %p72 = scmp.ne.s32.totalorder %s55, %s71
      %p73 = scmp.eq.s32.totalorder %s47, 0
      %p74 = por %p72, %p73
      %s76 = sadd.s32 %s75, 1
      %p79 = scmp.eq.s32.totalorder %s41, 7
      %p80 = scmp.ne.s32.totalorder %s75, %s77
      %p81 = scmp.eq.s32.totalorder %s41, 0
      %p82 = por %p80, %p81
      %p83 = scmp.ne.s32.totalorder %s75, %s77
      %p84 = scmp.eq.s32.totalorder %s46, 7
      %p85 = por %p83, %p84
      %p86 = scmp.ne.s32.totalorder %s77, %s78
      %p87 = scmp.eq.s32.totalorder %s46, 0
      %p88 = por %p86, %p87
      %p89 = scmp.ne.s32.totalorder %s77, %s78
      %p90 = scmp.eq.s32.totalorder %s47, 7
      %p91 = por %p89, %p90
      %p93 = scmp.ne.s32.totalorder %s78, %s92
      %p94 = scmp.eq.s32.totalorder %s47, 0
      %p95 = por %p93, %p94
      %s97 = sadd.s32 %s96, 1
      %p100 = scmp.eq.s32.totalorder %s41, 7
      %p101 = scmp.ne.s32.totalorder %s96, %s98
      %p102 = scmp.eq.s32.totalorder %s41, 0
      %p103 = por %p101, %p102
      %p104 = scmp.ne.s32.totalorder %s96, %s98
      %p105 = scmp.eq.s32.totalorder %s46, 7
      %p106 = por %p104, %p105
      %p107 = scmp.ne.s32.totalorder %s98, %s99
      %p108 = scmp.eq.s32.totalorder %s46, 0
      %p109 = por %p107, %p108
      %p110 = scmp.ne.s32.totalorder %s98, %s99
      %p111 = scmp.eq.s32.totalorder %s47, 7
      %p112 = por %p110, %p111
      %p114 = scmp.ne.s32.totalorder %s99, %s113
      %p115 = scmp.eq.s32.totalorder %s47, 0
      %p116 = por %p114, %p115
      %s118 = sadd.s32 %s117, 1
      %p121 = scmp.eq.s32.totalorder %s41, 7
      %p122 = scmp.ne.s32.totalorder %s117, %s119
      %p123 = scmp.eq.s32.totalorder %s41, 0
      %p124 = por %p122, %p123
      %p125 = scmp.ne.s32.totalorder %s117, %s119
      %p126 = scmp.eq.s32.totalorder %s46, 7
      %p127 = por %p125, %p126
      %p128 = scmp.ne.s32.totalorder %s119, %s120
      %p129 = scmp.eq.s32.totalorder %s46, 0
      %p130 = por %p128, %p129
      %p131 = scmp.ne.s32.totalorder %s119, %s120
      %p132 = scmp.eq.s32.totalorder %s47, 7
      %p133 = por %p131, %p132
      %p135 = scmp.ne.s32.totalorder %s120, %s134
      %p136 = scmp.eq.s32.totalorder %s47, 0
      %p137 = por %p135, %p136
      %s139 = sadd.s32 %s138, 1
      %p142 = scmp.eq.s32.totalorder %s41, 7
      %p143 = scmp.ne.s32.totalorder %s138, %s140
      %p144 = scmp.eq.s32.totalorder %s41, 0
      %p145 = por %p143, %p144
      %p146 = scmp.ne.s32.totalorder %s138, %s140
      %p147 = scmp.eq.s32.totalorder %s46, 7
      %p148 = por %p146, %p147
      %p149 = scmp.ne.s32.totalorder %s140, %s141
      %p150 = scmp.eq.s32.totalorder %s46, 0
      %p151 = por %p149, %p150
      %p152 = scmp.ne.s32.totalorder %s140, %s141
      %p153 = scmp.eq.s32.totalorder %s47, 7
      %p154 = por %p152, %p153
      %p156 = scmp.ne.s32.totalorder %s141, %s155
      %p157 = scmp.eq.s32.totalorder %s47, 0
      %p158 = por %p156, %p157
      %s160 = sadd.s32 %s159, 1
      %p163 = scmp.eq.s32.totalorder %s41, 7
      %p164 = scmp.ne.s32.totalorder %s159, %s161
      %p165 = scmp.eq.s32.totalorder %s41, 0
      %p166 = por %p164, %p165
      %p167 = scmp.ne.s32.totalorder %s159, %s161
      %p168 = scmp.eq.s32.totalorder %s46, 7
      %p169 = por %p167, %p168
      %p170 = scmp.ne.s32.totalorder %s161, %s162
      %p171 = scmp.eq.s32.totalorder %s46, 0
      %p172 = por %p170, %p171
      %p173 = scmp.ne.s32.totalorder %s161, %s162
      %p174 = scmp.eq.s32.totalorder %s47, 7
      %p175 = por %p173, %p174
      %p177 = scmp.ne.s32.totalorder %s162, %s176
      %p178 = scmp.eq.s32.totalorder %s47, 0
      %p179 = por %p177, %p178
      %s181 = sadd.s32 %s180, 1
      %p184 = scmp.eq.s32.totalorder %s41, 7
      %p185 = scmp.ne.s32.totalorder %s180, %s182
      %p186 = scmp.eq.s32.totalorder %s41, 0
      %p187 = por %p185, %p186
      %p188 = scmp.ne.s32.totalorder %s180, %s182
      %p189 = scmp.eq.s32.totalorder %s46, 7
      %p190 = por %p188, %p189
      %p191 = scmp.ne.s32.totalorder %s182, %s183
      %p192 = scmp.eq.s32.totalorder %s46, 0
      %p193 = por %p191, %p192
      %p194 = scmp.ne.s32.totalorder %s182, %s183
      %p195 = scmp.eq.s32.totalorder %s47, 7
      %p196 = por %p194, %p195
      %p198 = scmp.ne.s32.totalorder %s183, %s197
      %p199 = scmp.eq.s32.totalorder %s47, 0
      %p200 = por %p198, %p199
      %s202 = sadd.s32 %s201, 1
      %p205 = scmp.eq.s32.totalorder %s41, 7
      %p206 = scmp.ne.s32.totalorder %s201, %s203
      %p207 = scmp.eq.s32.totalorder %s41, 0
      %p208 = por %p206, %p207
      %p209 = scmp.ne.s32.totalorder %s201, %s203
      %p210 = scmp.eq.s32.totalorder %s46, 7
      %p211 = por %p209, %p210
      %p212 = scmp.ne.s32.totalorder %s203, %s204
      %p213 = scmp.eq.s32.totalorder %s46, 0
      %p214 = por %p212, %p213
      %p215 = scmp.ne.s32.totalorder %s203, %s204
      %p216 = scmp.eq.s32.totalorder %s47, 7
      %p217 = por %p215, %p216
      %p219 = scmp.ne.s32.totalorder %s204, %s218
      %p220 = scmp.eq.s32.totalorder %s47, 0
      %p221 = por %p219, %p220
      %s223 = sadd.s32 %s222, 1
      %p226 = scmp.eq.s32.totalorder %s41, 7
      %p227 = scmp.ne.s32.totalorder %s222, %s224
      %p228 = scmp.eq.s32.totalorder %s41, 0
      %p229 = por %p227, %p228
      %p230 = scmp.ne.s32.totalorder %s222, %s224
      %p231 = scmp.eq.s32.totalorder %s46, 7
      %p232 = por %p230, %p231
      %p233 = scmp.ne.s32.totalorder %s224, %s225
      %p234 = scmp.eq.s32.totalorder %s46, 0
      %p235 = por %p233, %p234
      %p236 = scmp.ne.s32.totalorder %s224, %s225
      %p237 = scmp.eq.s32.totalorder %s47, 7
      %p238 = por %p236, %p237
      %p240 = scmp.ne.s32.totalorder %s225, %s239
      %p241 = scmp.eq.s32.totalorder %s47, 0
      %p242 = por %p240, %p241
      %s244 = sadd.s32 %s243, 1
      %p247 = scmp.eq.s32.totalorder %s41, 7
      %p248 = scmp.ne.s32.totalorder %s243, %s245
      %p249 = scmp.eq.s32.totalorder %s41, 0
      %p250 = por %p248, %p249
      %p251 = scmp.ne.s32.totalorder %s243, %s245
      %p252 = scmp.eq.s32.totalorder %s46, 7
      %p253 = por %p251, %p252
      %p254 = scmp.ne.s32.totalorder %s245, %s246
      %p255 = scmp.eq.s32.totalorder %s46, 0
      %p256 = por %p254, %p255
      %p257 = scmp.ne.s32.totalorder %s245, %s246
      %p258 = scmp.eq.s32.totalorder %s47, 7
      %p259 = por %p257, %p258
      %p261 = scmp.ne.s32.totalorder %s246, %s260
      %p262 = scmp.eq.s32.totalorder %s47, 0
      %p263 = por %p261, %p262
      %s265 = sadd.s32 %s264, 1
      %p268 = scmp.eq.s32.totalorder %s41, 7
      %p269 = scmp.ne.s32.totalorder %s264, %s266
      %p270 = scmp.eq.s32.totalorder %s41, 0
      %p271 = por %p269, %p270
      %p272 = scmp.ne.s32.totalorder %s264, %s266
      %p273 = scmp.eq.s32.totalorder %s46, 7
      %p274 = por %p272, %p273
      %p275 = scmp.ne.s32.totalorder %s266, %s267
      %p276 = scmp.eq.s32.totalorder %s46, 0
      %p277 = por %p275, %p276
      %p278 = scmp.ne.s32.totalorder %s266, %s267
      %p279 = scmp.eq.s32.totalorder %s47, 7
      %p280 = por %p278, %p279
      %p282 = scmp.ne.s32.totalorder %s267, %s281
      %p283 = scmp.eq.s32.totalorder %s47, 0
      %p284 = por %p282, %p283
      %s286 = sadd.s32 %s285, 1
      %p289 = scmp.eq.s32.totalorder %s41, 7
      %p290 = scmp.ne.s32.totalorder %s285, %s287
      %p291 = scmp.eq.s32.totalorder %s41, 0
      %p292 = por %p290, %p291
      %p293 = scmp.ne.s32.totalorder %s285, %s287
      %p294 = scmp.eq.s32.totalorder %s46, 7
      %p295 = por %p293, %p294
      %p296 = scmp.ne.s32.totalorder %s287, %s288
      %p297 = scmp.eq.s32.totalorder %s46, 0
      %p298 = por %p296, %p297
      %p299 = scmp.ne.s32.totalorder %s287, %s288
      %p300 = scmp.eq.s32.totalorder %s47, 7
      %p301 = por %p299, %p300
      %p303 = scmp.ne.s32.totalorder %s288, %s302
      %p304 = scmp.eq.s32.totalorder %s47, 0
      %p305 = por %p303, %p304
      %s307 = sadd.s32 %s306, 1
      %p310 = scmp.eq.s32.totalorder %s41, 7
      %p311 = scmp.ne.s32.totalorder %s306, %s308
      %p312 = scmp.eq.s32.totalorder %s41, 0
      %p313 = por %p311, %p312
      %p314 = scmp.ne.s32.totalorder %s306, %s308
      %p315 = scmp.eq.s32.totalorder %s46, 7
      %p316 = por %p314, %p315
      %p317 = scmp.ne.s32.totalorder %s308, %s309
      %p318 = scmp.eq.s32.totalorder %s46, 0
      %p319 = por %p317, %p318
      %p320 = scmp.ne.s32.totalorder %s308, %s309
      %p321 = scmp.eq.s32.totalorder %s47, 7
      %p322 = por %p320, %p321
      %p324 = scmp.ne.s32.totalorder %s309, %s323
      %p325 = scmp.eq.s32.totalorder %s47, 0
      %p326 = por %p324, %p325
      %s328 = sadd.s32 %s327, 1
      %p331 = scmp.eq.s32.totalorder %s41, 7
      %p332 = scmp.ne.s32.totalorder %s327, %s329
      %p333 = scmp.eq.s32.totalorder %s41, 0
      %p334 = por %p332, %p333
      %p335 = scmp.ne.s32.totalorder %s327, %s329
      %p336 = scmp.eq.s32.totalorder %s46, 7
      %p337 = por %p335, %p336
      %p338 = scmp.ne.s32.totalorder %s329, %s330
      %p339 = scmp.eq.s32.totalorder %s46, 0
      %p340 = por %p338, %p339
      %p341 = scmp.ne.s32.totalorder %s329, %s330
      %p342 = scmp.eq.s32.totalorder %s47, 7
      %p343 = por %p341, %p342
      %p345 = scmp.ne.s32.totalorder %s330, %s344
      %p346 = scmp.eq.s32.totalorder %s47, 0
      %p347 = por %p345, %p346
      %s349 = sadd.s32 %s348, 1
      %p352 = scmp.eq.s32.totalorder %s41, 7
      %p353 = scmp.ne.s32.totalorder %s348, %s350
      %p354 = scmp.eq.s32.totalorder %s41, 0
      %p355 = por %p353, %p354
      %p356 = scmp.ne.s32.totalorder %s348, %s350
      %p357 = scmp.eq.s32.totalorder %s46, 7
      %p358 = por %p356, %p357
      %p359 = scmp.ne.s32.totalorder %s350, %s351
      %p360 = scmp.eq.s32.totalorder %s46, 0
      %p361 = por %p359, %p360
      %p362 = scmp.ne.s32.totalorder %s350, %s351
      %p363 = scmp.eq.s32.totalorder %s47, 7
      %p364 = por %p362, %p363
      %p366 = scmp.ne.s32.totalorder %s351, %s365
      %p367 = scmp.eq.s32.totalorder %s47, 0
      %p368 = por %p366, %p367
      %s370 = sadd.s32 %s369, 1
      %p373 = scmp.eq.s32.totalorder %s41, 7
      %p374 = scmp.ne.s32.totalorder %s369, %s371
      %p375 = scmp.eq.s32.totalorder %s41, 0
      %p376 = por %p374, %p375
      %p377 = scmp.ne.s32.totalorder %s369, %s371
      %p378 = scmp.eq.s32.totalorder %s46, 7
      %p379 = por %p377, %p378
      %p380 = scmp.ne.s32.totalorder %s371, %s372
      %p381 = scmp.eq.s32.totalorder %s46, 0
      %p382 = por %p380, %p381
      %p383 = scmp.ne.s32.totalorder %s371, %s372
      %p384 = scmp.eq.s32.totalorder %s47, 7
      %p385 = por %p383, %p384
      %p387 = scmp.ne.s32.totalorder %s372, %s386
      %p388 = scmp.eq.s32.totalorder %s47, 0
      %p389 = por %p387, %p388
      %s391 = sadd.s32 %s390, 1
      %p394 = scmp.eq.s32.totalorder %s41, 7
      %p395 = scmp.ne.s32.totalorder %s390, %s392
      %p396 = scmp.eq.s32.totalorder %s41, 0
      %p397 = por %p395, %p396
      %p398 = scmp.ne.s32.totalorder %s390, %s392
      %p399 = scmp.eq.s32.totalorder %s46, 7
      %p400 = por %p398, %p399
      %p401 = scmp.ne.s32.totalorder %s392, %s393
      %p402 = scmp.eq.s32.totalorder %s46, 0
      %p403 = por %p401, %p402
      %p404 = scmp.ne.s32.totalorder %s392, %s393
      %p405 = scmp.eq.s32.totalorder %s47, 7
      %p406 = por %p404, %p405
      %p408 = scmp.ne.s32.totalorder %s393, %s407
      %p409 = scmp.eq.s32.totalorder %s47, 0
      %p410 = por %p408, %p409
      %s412 = sadd.s32 %s411, 1
      %p415 = scmp.eq.s32.totalorder %s41, 7
      %p416 = scmp.ne.s32.totalorder %s411, %s413
      %p417 = scmp.eq.s32.totalorder %s41, 0
      %p418 = por %p416, %p417
      %p419 = scmp.ne.s32.totalorder %s411, %s413
      %p420 = scmp.eq.s32.totalorder %s46, 7
      %p421 = por %p419, %p420
      %p422 = scmp.ne.s32.totalorder %s413, %s414
      %p423 = scmp.eq.s32.totalorder %s46, 0
      %p424 = por %p422, %p423
      %p425 = scmp.ne.s32.totalorder %s413, %s414
      %p426 = scmp.eq.s32.totalorder %s47, 7
      %p427 = por %p425, %p426
      %p429 = scmp.ne.s32.totalorder %s414, %s428
      %p430 = scmp.eq.s32.totalorder %s47, 0
      %p431 = por %p429, %p430
      %s433 = sadd.s32 %s432, 1
      %p436 = scmp.eq.s32.totalorder %s41, 7
      %p437 = scmp.ne.s32.totalorder %s432, %s434
      %p438 = scmp.eq.s32.totalorder %s41, 0
      %p439 = por %p437, %p438
      %p440 = scmp.ne.s32.totalorder %s432, %s434
      %p441 = scmp.eq.s32.totalorder %s46, 7
      %p442 = por %p440, %p441
      %p443 = scmp.ne.s32.totalorder %s434, %s435
      %p444 = scmp.eq.s32.totalorder %s46, 0
      %p445 = por %p443, %p444
      %p446 = scmp.ne.s32.totalorder %s434, %s435
      %p447 = scmp.eq.s32.totalorder %s47, 7
      %p448 = por %p446, %p447
      %p450 = scmp.ne.s32.totalorder %s435, %s449
      %p451 = scmp.eq.s32.totalorder %s47, 0
      %p452 = por %p450, %p451
      %s453 = ssub.s32 %s41, %s48
      %p454 = scmp.eq.s32.totalorder %s453, 0
      %s456 = sadd.s32 %s455, 1
      %s457 = scalar_select %p454, %s455, %s456
      %p460 = pneg %p454
      %p461 = scmp.eq.s32.totalorder %s41, 7
      %p462 = por %p460, %p461
      %p463 = scmp.ne.s32.totalorder %s455, %s458
      %p464 = scmp.eq.s32.totalorder %s41, 0
      %p465 = por %p463, %p464
      %p466 = scmp.ne.s32.totalorder %s455, %s458
      %p467 = scmp.eq.s32.totalorder %s46, 7
      %p468 = por %p466, %p467
      %p469 = scmp.ne.s32.totalorder %s458, %s459
      %p470 = scmp.eq.s32.totalorder %s46, 0
      %p471 = por %p469, %p470
      %p472 = scmp.ne.s32.totalorder %s458, %s459
      %p473 = scmp.eq.s32.totalorder %s47, 7
      %p474 = por %p472, %p473
      %p476 = scmp.ne.s32.totalorder %s459, %s475
      %p477 = scmp.eq.s32.totalorder %s47, 0
      %p478 = por %p476, %p477
      %s479 = ssub.s32 %s41, %s48
      %p480 = scmp.eq.s32.totalorder %s479, 0
      %s482 = sadd.s32 %s481, 1
      %s483 = scalar_select %p480, %s481, %s482
      %p486 = pneg %p480
      %p487 = scmp.eq.s32.totalorder %s41, 7
      %p488 = por %p486, %p487
      %p489 = scmp.ne.s32.totalorder %s481, %s484
      %p490 = scmp.eq.s32.totalorder %s41, 0
      %p491 = por %p489, %p490
      %p492 = scmp.ne.s32.totalorder %s481, %s484
      %p493 = scmp.eq.s32.totalorder %s46, 7
      %p494 = por %p492, %p493
      %p495 = scmp.ne.s32.totalorder %s484, %s485
      %p496 = scmp.eq.s32.totalorder %s46, 0
      %p497 = por %p495, %p496
      %p498 = scmp.ne.s32.totalorder %s484, %s485
      %p499 = scmp.eq.s32.totalorder %s47, 7
      %p500 = por %p498, %p499
      %p502 = scmp.ne.s32.totalorder %s485, %s501
      %p503 = scmp.eq.s32.totalorder %s47, 0
      %p504 = por %p502, %p503
      %p505 = scmp.le.s32.totalorder 1, %s41
      %p506 = scmp.lt.s32.totalorder %s41, 9
      %p507 = pnand %p505, %p506
      %p508 = pneg %p507
      // Predicated region
      $region9: #{tpu_custom_call.1} parent=5 // pred_check
        _
      $region10: #{tpu_custom_call.1} parent=5 // pred_check_branch
        %510 = sbr.rel (%p507) target = $region12
      $region11: #{tpu_custom_call.1} parent=5 // pred_region
        %s511 = ssub.s32 %s41, 1
        // Predicated region
        $region13: #{tpu_custom_call.1} parent=11 // pred_check
          %p512 = pneg %p88
        $region14: #{tpu_custom_call.1} parent=11 // pred_check_branch
          %514 = sbr.rel (%p512) target = $region16
        $region15: #{tpu_custom_call.1} parent=11 // pred_region
          %s516 = ssub.s32 256, 256
          %517 = vsyncadd [#allocation7], %s516
          %s518 = sshll.u32 [#allocation6], 4
          %s519 = int_to_ptr.vmem [resolvable:$true] %s518
          %524 = dma.hbm_to_vmem [thread:$0]  %s1, 256, %s519, [#allocation7], 128, 128, 8
        $region16: #{tpu_custom_call.1} parent=11 // pred_fallthru
          _
        // Predicated region
        $region17: #{tpu_custom_call.1} parent=11 // pred_check
          %p525 = pneg %p109
        $region18: #{tpu_custom_call.1} parent=11 // pred_check_branch
          %527 = sbr.rel (%p525) target = $region20
        $region19: #{tpu_custom_call.1} parent=11 // pred_region
          %s529 = ssub.s32 256, 256
          %530 = vsyncadd [#allocation7], %s529
          %s531 = sshll.u32 [#allocation8], 4
          %s532 = int_to_ptr.vmem [resolvable:$true] %s531
          %537 = dma.hbm_to_vmem [thread:$0]  %s2, 256, %s532, [#allocation7], 128, 128, 8
        $region20: #{tpu_custom_call.1} parent=11 // pred_fallthru
          _
        // Predicated region
        $region21: #{tpu_custom_call.1} parent=11 // pred_check
          %p538 = pneg %p130
        $region22: #{tpu_custom_call.1} parent=11 // pred_check_branch
          %540 = sbr.rel (%p538) target = $region24
        $region23: #{tpu_custom_call.1} parent=11 // pred_region
          _
        $region24: #{tpu_custom_call.1} parent=11 // pred_fallthru
          _
        // Predicated region
        $region25: #{tpu_custom_call.1} parent=11 // pred_check
          %p541 = pneg %p151
        $region26: #{tpu_custom_call.1} parent=11 // pred_check_branch
          %543 = sbr.rel (%p541) target = $region28
        $region27: #{tpu_custom_call.1} parent=11 // pred_region
          _
        $region28: #{tpu_custom_call.1} parent=11 // pred_fallthru
          _
        // Predicated region
        $region29: #{tpu_custom_call.1} parent=11 // pred_check
          %p544 = pneg %p172
        $region30: #{tpu_custom_call.1} parent=11 // pred_check_branch
          %546 = sbr.rel (%p544) target = $region32
        $region31: #{tpu_custom_call.1} parent=11 // pred_region
          %s548 = ssub.s32 512, 512
          %549 = vsyncadd [#allocation10], %s548
          %s550 = sshll.u32 [#allocation9], 4
          %s551 = int_to_ptr.vmem [resolvable:$true] %s550
          %556 = dma.hbm_to_vmem [thread:$0]  %s5, 512, %s551, [#allocation10], 128, 128, 8
        $region32: #{tpu_custom_call.1} parent=11 // pred_fallthru
          _
        // Predicated region
        $region33: #{tpu_custom_call.1} parent=11 // pred_check
          %p557 = pneg %p193
        $region34: #{tpu_custom_call.1} parent=11 // pred_check_branch
          %559 = sbr.rel (%p557) target = $region36
        $region35: #{tpu_custom_call.1} parent=11 // pred_region
          _
        $region36: #{tpu_custom_call.1} parent=11 // pred_fallthru
          _
        // Predicated region
        $region37: #{tpu_custom_call.1} parent=11 // pred_check
          %p560 = pneg %p214
        $region38: #{tpu_custom_call.1} parent=11 // pred_check_branch
          %562 = sbr.rel (%p560) target = $region40
        $region39: #{tpu_custom_call.1} parent=11 // pred_region
          _
        $region40: #{tpu_custom_call.1} parent=11 // pred_fallthru
          _
        // Predicated region
        $region41: #{tpu_custom_call.1} parent=11 // pred_check
          %p563 = pneg %p235
        $region42: #{tpu_custom_call.1} parent=11 // pred_check_branch
          %565 = sbr.rel (%p563) target = $region44
        $region43: #{tpu_custom_call.1} parent=11 // pred_region
          %s567 = ssub.s32 512, 512
          %568 = vsyncadd [#allocation10], %s567
          %s569 = sshll.u32 [#allocation11], 4
          %s570 = int_to_ptr.vmem [resolvable:$true] %s569
          %575 = dma.hbm_to_vmem [thread:$0]  %s8, 512, %s570, [#allocation10], 128, 128, 8
        $region44: #{tpu_custom_call.1} parent=11 // pred_fallthru
          _
        // Predicated region
        $region45: #{tpu_custom_call.1} parent=11 // pred_check
          %p576 = pneg %p256
        $region46: #{tpu_custom_call.1} parent=11 // pred_check_branch
          %578 = sbr.rel (%p576) target = $region48
        $region47: #{tpu_custom_call.1} parent=11 // pred_region
          %s580 = ssub.s32 1024, 1024
          %581 = vsyncadd [#allocation13], %s580
          %s582 = sshll.u32 [#allocation12], 4
          %s583 = int_to_ptr.vmem [resolvable:$true] %s582
          %588 = dma.hbm_to_vmem [thread:$0]  %s9, 1024, %s583, [#allocation13], 128, 128, 8
        $region48: #{tpu_custom_call.1} parent=11 // pred_fallthru
          _
        // Predicated region
        $region49: #{tpu_custom_call.1} parent=11 // pred_check
          %p589 = pneg %p277
        $region50: #{tpu_custom_call.1} parent=11 // pred_check_branch
          %591 = sbr.rel (%p589) target = $region52
        $region51: #{tpu_custom_call.1} parent=11 // pred_region
          %s593 = ssub.s32 512, 512
          %594 = vsyncadd [#allocation13], %s593
          %s595 = sshll.u32 [#allocation14], 4
          %s596 = int_to_ptr.vmem [resolvable:$true] %s595
          %601 = dma.hbm_to_vmem [thread:$0]  %s10, 512, %s596, [#allocation13], 128, 128, 8
        $region52: #{tpu_custom_call.1} parent=11 // pred_fallthru
          _
        // Predicated region
        $region53: #{tpu_custom_call.1} parent=11 // pred_check
          %p602 = pneg %p298
        $region54: #{tpu_custom_call.1} parent=11 // pred_check_branch
          %604 = sbr.rel (%p602) target = $region56
        $region55: #{tpu_custom_call.1} parent=11 // pred_region
          _
        $region56: #{tpu_custom_call.1} parent=11 // pred_fallthru
          _
        // Predicated region
        $region57: #{tpu_custom_call.1} parent=11 // pred_check
          %p605 = pneg %p319
        $region58: #{tpu_custom_call.1} parent=11 // pred_check_branch
          %607 = sbr.rel (%p605) target = $region60
        $region59: #{tpu_custom_call.1} parent=11 // pred_region
          _
        $region60: #{tpu_custom_call.1} parent=11 // pred_fallthru
          _
        // Predicated region
        $region61: #{tpu_custom_call.1} parent=11 // pred_check
          %p608 = pneg %p340
        $region62: #{tpu_custom_call.1} parent=11 // pred_check_branch
          %610 = sbr.rel (%p608) target = $region64
        $region63: #{tpu_custom_call.1} parent=11 // pred_region
          %s612 = ssub.s32 512, 512
          %613 = vsyncadd [#allocation16], %s612
          %s614 = sshll.u32 [#allocation15], 4
          %s615 = int_to_ptr.vmem [resolvable:$true] %s614
          %620 = dma.hbm_to_vmem [thread:$0]  %s13, 512, %s615, [#allocation16], 128, 128, 8
        $region64: #{tpu_custom_call.1} parent=11 // pred_fallthru
          _
        // Predicated region
        $region65: #{tpu_custom_call.1} parent=11 // pred_check
          %p621 = pneg %p361
        $region66: #{tpu_custom_call.1} parent=11 // pred_check_branch
          %623 = sbr.rel (%p621) target = $region68
        $region67: #{tpu_custom_call.1} parent=11 // pred_region
          %s625 = ssub.s32 1024, 1024
          %626 = vsyncadd [#allocation16], %s625
          %s627 = sshll.u32 [#allocation17], 4
          %s628 = int_to_ptr.vmem [resolvable:$true] %s627
          %633 = dma.hbm_to_vmem [thread:$0]  %s14, 1024, %s628, [#allocation16], 128, 128, 8
        $region68: #{tpu_custom_call.1} parent=11 // pred_fallthru
          _
        // Predicated region
        $region69: #{tpu_custom_call.1} parent=11 // pred_check
          %p634 = pneg %p382
        $region70: #{tpu_custom_call.1} parent=11 // pred_check_branch
          %636 = sbr.rel (%p634) target = $region72
        $region71: #{tpu_custom_call.1} parent=11 // pred_region
          %s638 = ssub.s32 512, 512
          %639 = vsyncadd [#allocation19], %s638
          %s640 = sshll.u32 [#allocation18], 4
          %s641 = int_to_ptr.vmem [resolvable:$true] %s640
          %646 = dma.hbm_to_vmem [thread:$0]  %s15, 512, %s641, [#allocation19], 128, 128, 8
        $region72: #{tpu_custom_call.1} parent=11 // pred_fallthru
          _
        // Predicated region
        $region73: #{tpu_custom_call.1} parent=11 // pred_check
          %p647 = pneg %p403
        $region74: #{tpu_custom_call.1} parent=11 // pred_check_branch
          %649 = sbr.rel (%p647) target = $region76
        $region75: #{tpu_custom_call.1} parent=11 // pred_region
          _
        $region76: #{tpu_custom_call.1} parent=11 // pred_fallthru
          _
        // Predicated region
        $region77: #{tpu_custom_call.1} parent=11 // pred_check
          %p650 = pneg %p424
        $region78: #{tpu_custom_call.1} parent=11 // pred_check_branch
          %652 = sbr.rel (%p650) target = $region80
        $region79: #{tpu_custom_call.1} parent=11 // pred_region
          %s654 = ssub.s32 512, 512
          %655 = vsyncadd [#allocation19], %s654
          %s656 = sshll.u32 [#allocation20], 4
          %s657 = int_to_ptr.vmem [resolvable:$true] %s656
          %662 = dma.hbm_to_vmem [thread:$0]  %s17, 512, %s657, [#allocation19], 128, 128, 8
        $region80: #{tpu_custom_call.1} parent=11 // pred_fallthru
          _
        // Predicated region
        $region81: #{tpu_custom_call.1} parent=11 // pred_check
          %p663 = pneg %p445
        $region82: #{tpu_custom_call.1} parent=11 // pred_check_branch
          %665 = sbr.rel (%p663) target = $region84
        $region83: #{tpu_custom_call.1} parent=11 // pred_region
          _
        $region84: #{tpu_custom_call.1} parent=11 // pred_fallthru
          _
      $region12: #{tpu_custom_call.1} parent=5 // pred_fallthru
        _
      %p666 = scmp.lt.s32.totalorder %s41, 8
      // Predicated region
      $region85: #{tpu_custom_call.1} parent=5 // pred_check
        %p667 = pneg %p666
      $region86: #{tpu_custom_call.1} parent=5 // pred_check_branch
        %669 = sbr.rel (%p667) target = $region88
      $region87: #{tpu_custom_call.1} parent=5 // pred_region
        // Predicated region
        $region89: #{tpu_custom_call.1} parent=87 // pred_check
          %p670 = pneg %p61
        $region90: #{tpu_custom_call.1} parent=87 // pred_check_branch
          %672 = sbr.rel (%p670) target = $region92
        $region91: #{tpu_custom_call.1} parent=87 // pred_region
          %s673 = sand.u32 %s51, 1
          %s674 = scalar_lea.sflag [#allocation4], %s673
          %s675 = sand.u32 %s51, 1
          %s676 = smul.addr %s675, 2
          %s677 = scalar_lea.vmem [#allocation3], %s676
          %s679 = ssub.s32 32, 32
          %680 = vsyncadd %s674, %s679
          %s681 = smul.addr %s41, 32
          %s682 = scalar_lea.hbm %s0, %s681
          %s684 = sshll.u32 %s677, 4
          %s685 = int_to_ptr.vmem [resolvable:$true] %s684
          %687 = dma.hbm_to_vmem [thread:$0]  %s682, 32, %s685, %s674
        $region92: #{tpu_custom_call.1} parent=87 // pred_fallthru
          _
      $region88: #{tpu_custom_call.1} parent=5 // pred_fallthru
        _
      %p688 = scmp.le.s32.totalorder 1, %s41
      %p689 = scmp.lt.s32.totalorder %s41, 9
      %p690 = pnand %p688, %p689
      %p691 = pneg %p690
      // Predicated region
      $region93: #{tpu_custom_call.1} parent=5 // pred_check
        _
      $region94: #{tpu_custom_call.1} parent=5 // pred_check_branch
        %693 = sbr.rel (%p690) target = $region96
      $region95: #{tpu_custom_call.1} parent=5 // pred_region
        %s694 = ssub.s32 %s41, 1
        %s695 = sand.u32 %s54, 1
        %s696 = scalar_lea.sflag [#allocation4], %s695
        %s697 = sand.u32 %s54, 1
        %s698 = smul.addr %s697, 2
        %s699 = scalar_lea.vmem [#allocation3], %s698
        // Predicated region
        $region97: #{tpu_custom_call.1} parent=95 // pred_check
          %p700 = pneg %p67
        $region98: #{tpu_custom_call.1} parent=95 // pred_check_branch
          %702 = sbr.rel (%p700) target = $region100
        $region99: #{tpu_custom_call.1} parent=95 // pred_region
          %703 = dma.done %s696, 32
        $region100: #{tpu_custom_call.1} parent=95 // pred_fallthru
          _
        // Predicated region
        $region101: #{tpu_custom_call.1} parent=95 // pred_check
          %p704 = pneg %p88
        $region102: #{tpu_custom_call.1} parent=95 // pred_check_branch
          %706 = sbr.rel (%p704) target = $region104
        $region103: #{tpu_custom_call.1} parent=95 // pred_region
          %707 = dma.done [#allocation7], 256
        $region104: #{tpu_custom_call.1} parent=95 // pred_fallthru
          _
        // Predicated region
        $region105: #{tpu_custom_call.1} parent=95 // pred_check
          %p708 = pneg %p109
        $region106: #{tpu_custom_call.1} parent=95 // pred_check_branch
          %710 = sbr.rel (%p708) target = $region108
        $region107: #{tpu_custom_call.1} parent=95 // pred_region
          %711 = dma.done [#allocation7], 256
        $region108: #{tpu_custom_call.1} parent=95 // pred_fallthru
          _
        // Predicated region
        $region109: #{tpu_custom_call.1} parent=95 // pred_check
          %p712 = pneg %p172
        $region110: #{tpu_custom_call.1} parent=95 // pred_check_branch
          %714 = sbr.rel (%p712) target = $region112
        $region111: #{tpu_custom_call.1} parent=95 // pred_region
          %715 = dma.done [#allocation10], 512
        $region112: #{tpu_custom_call.1} parent=95 // pred_fallthru
          _
        // Predicated region
        $region113: #{tpu_custom_call.1} parent=95 // pred_check
          %p716 = pneg %p235
        $region114: #{tpu_custom_call.1} parent=95 // pred_check_branch
          %718 = sbr.rel (%p716) target = $region116
        $region115: #{tpu_custom_call.1} parent=95 // pred_region
          %719 = dma.done [#allocation10], 512
        $region116: #{tpu_custom_call.1} parent=95 // pred_fallthru
          _
        // Predicated region
        $region117: #{tpu_custom_call.1} parent=95 // pred_check
          %p720 = pneg %p256
        $region118: #{tpu_custom_call.1} parent=95 // pred_check_branch
          %722 = sbr.rel (%p720) target = $region120
        $region119: #{tpu_custom_call.1} parent=95 // pred_region
          %723 = dma.done [#allocation13], 1024
        $region120: #{tpu_custom_call.1} parent=95 // pred_fallthru
          _
        // Predicated region
        $region121: #{tpu_custom_call.1} parent=95 // pred_check
          %p724 = pneg %p277
        $region122: #{tpu_custom_call.1} parent=95 // pred_check_branch
          %726 = sbr.rel (%p724) target = $region124
        $region123: #{tpu_custom_call.1} parent=95 // pred_region
          %727 = dma.done [#allocation13], 512
        $region124: #{tpu_custom_call.1} parent=95 // pred_fallthru
          _
        // Predicated region
        $region125: #{tpu_custom_call.1} parent=95 // pred_check
          %p728 = pneg %p340
        $region126: #{tpu_custom_call.1} parent=95 // pred_check_branch
          %730 = sbr.rel (%p728) target = $region128
        $region127: #{tpu_custom_call.1} parent=95 // pred_region
          %731 = dma.done [#allocation16], 512
        $region128: #{tpu_custom_call.1} parent=95 // pred_fallthru
          _
        // Predicated region
        $region129: #{tpu_custom_call.1} parent=95 // pred_check
          %p732 = pneg %p361
        $region130: #{tpu_custom_call.1} parent=95 // pred_check_branch
          %734 = sbr.rel (%p732) target = $region132
        $region131: #{tpu_custom_call.1} parent=95 // pred_region
          %735 = dma.done [#allocation16], 1024
        $region132: #{tpu_custom_call.1} parent=95 // pred_fallthru
          _
        // Predicated region
        $region133: #{tpu_custom_call.1} parent=95 // pred_check
          %p736 = pneg %p382
        $region134: #{tpu_custom_call.1} parent=95 // pred_check_branch
          %738 = sbr.rel (%p736) target = $region136
        $region135: #{tpu_custom_call.1} parent=95 // pred_region
          %739 = dma.done [#allocation19], 512
        $region136: #{tpu_custom_call.1} parent=95 // pred_fallthru
          _
        // Predicated region
        $region137: #{tpu_custom_call.1} parent=95 // pred_check
          %p740 = pneg %p424
        $region138: #{tpu_custom_call.1} parent=95 // pred_check_branch
          %742 = sbr.rel (%p740) target = $region140
        $region139: #{tpu_custom_call.1} parent=95 // pred_region
          %743 = dma.done [#allocation19], 512
        $region140: #{tpu_custom_call.1} parent=95 // pred_fallthru
          _
        %s744 = sand.u32 %s54, 1
        %s745 = scalar_lea.sflag [#allocation4], %s744
        %s746 = sand.u32 %s54, 1
        %s747 = smul.addr %s746, 2
        %s748 = scalar_lea.vmem [#allocation3], %s747
        %p749 = pneg %p67
        %p750 = pneg %p64
        %p751 = pneg %p88
        %p752 = pneg %p85
        %p753 = pneg %p109
        %p754 = pneg %p106
        %p755 = pneg %p130
        %p756 = pneg %p127
        %p757 = pneg %p151
        %p758 = pneg %p148
        %p759 = pneg %p172
        %p760 = pneg %p169
        %p761 = pneg %p193
        %p762 = pneg %p190
        %p763 = pneg %p214
        %p764 = pneg %p211
        %p765 = pneg %p235
        %p766 = pneg %p232
        %p767 = pneg %p256
        %p768 = pneg %p253
        %p769 = pneg %p277
        %p770 = pneg %p274
        %p771 = pneg %p298
        %p772 = pneg %p295
        %p773 = pneg %p319
        %p774 = pneg %p316
        %p775 = pneg %p340
        %p776 = pneg %p337
        %p777 = pneg %p361
        %p778 = pneg %p358
        %p779 = pneg %p382
        %p780 = pneg %p379
        %p781 = pneg %p403
        %p782 = pneg %p400
        %p783 = pneg %p424
        %p784 = pneg %p421
        %p785 = pneg %p445
        %p786 = pneg %p442
        %p787 = pneg %p471
        %p788 = pneg %p468
        %s789 = sand.u32 %s458, 1
        %s790 = scalar_lea.sflag [#allocation5], %s789
        %s791 = sand.u32 %s458, 1
        %s792 = smul.addr %s791, 2
        %s793 = scalar_lea.vmem [#allocation21], %s792
        %p794 = pneg %p497
        %p795 = pneg %p494
        %s796 = sand.u32 %s484, 1
        %s797 = scalar_lea.sflag [#allocation23], %s796
        %s798 = sand.u32 %s484, 1
        %s799 = smul.addr %s798, 2
        %s800 = scalar_lea.vmem [#allocation22], %s799
        %p801 = scmp.eq.s32.totalorder %s46, 0
        // Predicated region
        $region141: #{tpu_custom_call.1} parent=95 // pred_check
          %p802 = pneg %p801
        $region142: #{tpu_custom_call.1} parent=95 // pred_check_branch
          %804 = sbr.rel (%p802) target = $region144
        $region143: #{tpu_custom_call.1} parent=95 // pred_region
          %v805 = vld [vmem:[%s3] sm:$0x3]
          %vm806 = vcmask 254976
          %807 = vst.msk [vmem:[#allocation2] sm:$0x3] %vm806, %v805
        $region144: #{tpu_custom_call.1} parent=95 // pred_fallthru
          _
        %v808 = vld [vmem:[%s699] sm:$0x3]
        %v809 = vld [vmem:[#allocation2] sm:$0x3]
        %v810 = vld [vmem:[#allocation9] sm:$0xff]
        %v811 = vld [vmem:[#allocation9 + $0x8] sm:$0xff]
        %v812 = vld [vmem:[#allocation9 + $0x10] sm:$0xff]
        %v813 = vld [vmem:[#allocation9 + $0x18] sm:$0xff]
        %v814 = vld [vmem:[%s6] sm:$0x1]
        %v816 = vlaneseq
        %v817 = vshrl.u32 %v816, 7
        %v818 = vsub.s32 0, %v817
        %v819 = vrot.slane %v814, %v818
        %vm821 = vcmask 261120
        %v823 = vsel %vm821, %v809, 0
        %825 = vmatprep.subr.mxu0 0.0
        %826 = vmatpush1.msra.mxu0 0.0
        %827 = vmatprep.subr.mxu0 0.0
        %828 = vmatpush1.msra.mxu0 0.0
        %829 = vmatprep.subr.mxu0 0.0
        %830 = vmatpush1.msra.mxu0 0.0
        %831 = vmatprep.subr.mxu0 0.0
        %832 = vmatpush1.msra.mxu0 0.0
        %833 = vmatprep.subr.mxu0 0.0
        %834 = vmatpush1.msra.mxu0 0.0
        %835 = vmatprep.subr.mxu0 0.0
        %836 = vmatpush1.msra.mxu0 0.0
        %837 = vmatprep.subr.mxu0 0.0
        %838 = vmatpush1.msra.mxu0 0.0
        %839 = vmatprep.subr.mxu0 0.0
        %840 = vmatpush1.msra.mxu0 0.0
        %841 = vmatprep.subr.mxu0 0.0
        %842 = vmatpush1.msra.mxu0 0.0
        %843 = vmatprep.subr.mxu0 0.0
        %844 = vmatpush1.msra.mxu0 0.0
        %845 = vmatprep.subr.mxu0 0.0
        %846 = vmatpush1.msra.mxu0 0.0
        %847 = vmatprep.subr.mxu0 0.0
        %848 = vmatpush1.msra.mxu0 0.0
        %849 = vmatprep.subr.mxu0 0.0
        %850 = vmatpush1.msra.mxu0 %v813
        %851 = vmatprep.subr.mxu0 0.0
        %852 = vmatpush1.msra.mxu0 %v812
        %853 = vmatprep.subr.mxu0 0.0
        %854 = vmatpush1.msra.mxu0 %v811
        %855 = vmatprep.subr.mxu0 0.0
        %856 = vmatpush1.msra.mxu0 %v810
        %857 = vmatprep.subr.mxu0 0.0
        %858 = vmatpush2.msra.mxu0 0.0
        %859 = vmatprep.subr.mxu0 0.0
        %860 = vmatpush2.msra.mxu0 0.0
        %861 = vmatprep.subr.mxu0 0.0
        %862 = vmatpush2.msra.mxu0 0.0
        %863 = vmatprep.subr.mxu0 0.0
        %864 = vmatpush2.msra.mxu0 0.0
        %865 = vmatprep.subr.mxu0 0.0
        %866 = vmatpush2.msra.mxu0 0.0
        %867 = vmatprep.subr.mxu0 0.0
        %868 = vmatpush2.msra.mxu0 0.0
        %869 = vmatprep.subr.mxu0 0.0
        %870 = vmatpush2.msra.mxu0 0.0
        %871 = vmatprep.subr.mxu0 0.0
        %872 = vmatpush2.msra.mxu0 0.0
        %873 = vmatprep.subr.mxu0 0.0
        %874 = vmatpush2.msra.mxu0 0.0
        %875 = vmatprep.subr.mxu0 0.0
        %876 = vmatpush2.msra.mxu0 0.0
        %877 = vmatprep.subr.mxu0 0.0
        %878 = vmatpush2.msra.mxu0 0.0
        %879 = vmatprep.subr.mxu0 0.0
        %880 = vmatpush2.msra.mxu0 0.0
        %881 = vmatprep.subr.mxu0 0.0
        %882 = vmatpush2.msra.mxu0 0.0
        %883 = vmatprep.subr.mxu0 0.0
        %884 = vmatpush2.msra.mxu0 0.0
        %885 = vmatprep.subr.mxu0 0.0
        %886 = vmatpush2.msra.mxu0 0.0
        %887 = vmatprep.subr.mxu0 0.0
        %888 = vmatpush2.msra.mxu0 0.0
        %889 = vmatprep.mubr.f32.mxu0 0.0
        %890 = vmatmul.mubr.f32.gmra.mxu0 %v823
        %v891 = vpop.f32.mrf.mxu0
        %v892 = vadd.f32 %v819, %v891
        %v893 = vpop.f32.mrf.mxu0
        %894 = vdwg.mxu0
        %v897 = vunpack.c.l.s4 1966171168
        %v898 = vunpack.c.0.s8 %v897
        %v899 = vlaneseq
        %v900 = vshrl.u32 %v899, 7
        %v901 = vsub.s32 %v898, %v900
        %v902 = vrot.slane %v892, %v901
        %v903 = vcombine.high %v902, %v902
        %v905 = vunpack.c.l.s4 1966171168
        %v906 = vunpack.c.0.s8 %v905
        %v907 = vlaneseq
        %v908 = vshrl.u32 %v907, 7
        %v909 = vsub.s32 %v906, %v908
        %v910 = vrot.slane %v902, %v909
        %v912 = vunpack.c.l.s4 1966171168
        %v913 = vunpack.c.0.s8 %v912
        %v914 = vlaneseq
        %v915 = vshrl.u32 %v914, 7
        %v916 = vsub.s32 %v913, %v915
        %v917 = vrot.slane %v903, %v916
        %v918 = vld [vmem:[#allocation8] sm:$0xff]
        %v919 = vld [vmem:[#allocation8 + $0x8] sm:$0xff]
        %v920 = vlaneseq
        %v921 = vshrl.u32 %v920, 7
        %v922 = vsub.s32 0, %v921
        %v923 = vrot.slane %v910, %v922
        %v924 = vlaneseq
        %v925 = vshrl.u32 %v924, 7
        %v926 = vsub.s32 0, %v925
        %v927 = vrot.slane %v917, %v926
        %v930 = vadd.f32 %v923, %v918
        %v931 = vadd.f32 %v927, %v919
        %v932 = vtanh.pop %v930
        %v933 = vtanh.pop %v931
        %v934 = vld [vmem:[%s7] sm:$0x1]
        %v936 = vlaneseq
        %v937 = vshrl.u32 %v936, 7
        %v938 = vsub.s32 0, %v937
        %v939 = vrot.slane %v934, %v938
        %v941 = vmul.f32 %v932, %v939
        %v942 = vmul.f32 %v933, %v939
        %v943 = vsel %vm821, %v941, 0.0
        %944 = vadd.xlane.f32.xlu0 %v943
        %v945 = vpop.xlane.xlu0 %944
        %v946 = vsel %vm821, %v942, 0.0
        %947 = vadd.xlane.f32.xlu0 %v946
        %v948 = vpop.xlane.xlu0 %947
        %v949 = vld [vmem:[%s4] sm:$0x3]
        %vm950 = vcmp.eq.f32.partialorder %v949, 0.0
        %v953 = vlaneseq
        %v954 = vand.u32 %v953, 127
        %v955 = vlaneseq
        %v956 = vshrl.u32 %v955, 7
        %v957 = vsub.s32 %v954, %v956
        %v958 = vrot.slane %v945, %v957
        %v959 = vlaneseq
        %v960 = vshrl.u32 %v959, 7
        %v961 = vsub.s32 %v954, %v960
        %v962 = vrot.slane %v948, %v961
        %vm963 = vcmask 1041409
        %v964 = vsel %vm963, %v962, %v958
        %v966 = vsel %vm950, -inf, %v964
        %v969 = vunpack.c.l.s4 1966171168
        %v970 = vunpack.c.0.s8 %v969
        %v971 = vlaneseq
        %v972 = vshrl.u32 %v971, 7
        %v973 = vsub.s32 %v970, %v972
        %v974 = vrot.slane %v966, %v973
        %v975 = vcombine.high %v974, %v974
        %v977 = vunpack.c.l.s4 1966171168
        %v978 = vunpack.c.0.s8 %v977
        %v979 = vlaneseq
        %v980 = vshrl.u32 %v979, 7
        %v981 = vsub.s32 %v978, %v980
        %v982 = vrot.slane %v974, %v981
        %v984 = vunpack.c.l.s4 1966171168
        %v985 = vunpack.c.0.s8 %v984
        %v986 = vlaneseq
        %v987 = vshrl.u32 %v986, 7
        %v988 = vsub.s32 %v985, %v987
        %v989 = vrot.slane %v975, %v988
        %v990 = vld [vmem:[#allocation6] sm:$0xff]
        %v991 = vld [vmem:[#allocation6 + $0x8] sm:$0xff]
        %vm992 = vcmask 64512
        %v993 = vsel %vm992, %v982, 0
        %995 = vmatprep.subr.mxu0 0.0
        %996 = vmatpush1.msra.mxu0 0.0
        %997 = vmatprep.subr.mxu0 0.0
        %998 = vmatpush1.msra.mxu0 0.0
        %999 = vmatprep.subr.mxu0 0.0
        %1000 = vmatpush1.msra.mxu0 0.0
        %1001 = vmatprep.subr.mxu0 0.0
        %1002 = vmatpush1.msra.mxu0 0.0
        %1003 = vmatprep.subr.mxu0 0.0
        %1004 = vmatpush1.msra.mxu0 0.0
        %1005 = vmatprep.subr.mxu0 0.0
        %1006 = vmatpush1.msra.mxu0 0.0
        %1007 = vmatprep.subr.mxu0 0.0
        %1008 = vmatpush1.msra.mxu0 0.0
        %1009 = vmatprep.subr.mxu0 0.0
        %1010 = vmatpush1.msra.mxu0 0.0
        %1011 = vmatprep.subr.mxu0 0.0
        %1012 = vmatpush1.msra.mxu0 0.0
        %1013 = vmatprep.subr.mxu0 0.0
        %1014 = vmatpush1.msra.mxu0 0.0
        %1015 = vmatprep.subr.mxu0 0.0
        %1016 = vmatpush1.msra.mxu0 0.0
        %1017 = vmatprep.subr.mxu0 0.0
        %1018 = vmatpush1.msra.mxu0 0.0
        %1019 = vmatprep.subr.mxu0 0.0
        %1020 = vmatpush1.msra.mxu0 0.0
        %1021 = vmatprep.subr.mxu0 0.0
        %1022 = vmatpush1.msra.mxu0 0.0
        %1023 = vmatprep.subr.mxu0 0.0
        %1024 = vmatpush1.msra.mxu0 0.0
        %1025 = vmatprep.subr.mxu0 0.0
        %1026 = vmatpush1.msra.mxu0 %v990
        %1027 = vmatprep.subr.mxu0 0.0
        %1028 = vmatpush2.msra.mxu0 0.0
        %1029 = vmatprep.subr.mxu0 0.0
        %1030 = vmatpush2.msra.mxu0 0.0
        %1031 = vmatprep.subr.mxu0 0.0
        %1032 = vmatpush2.msra.mxu0 0.0
        %1033 = vmatprep.subr.mxu0 0.0
        %1034 = vmatpush2.msra.mxu0 0.0
        %1035 = vmatprep.subr.mxu0 0.0
        %1036 = vmatpush2.msra.mxu0 0.0
        %1037 = vmatprep.subr.mxu0 0.0
        %1038 = vmatpush2.msra.mxu0 0.0
        %1039 = vmatprep.subr.mxu0 0.0
        %1040 = vmatpush2.msra.mxu0 0.0
        %1041 = vmatprep.subr.mxu0 0.0
        %1042 = vmatpush2.msra.mxu0 0.0
        %1043 = vmatprep.subr.mxu0 0.0
        %1044 = vmatpush2.msra.mxu0 0.0
        %1045 = vmatprep.subr.mxu0 0.0
        %1046 = vmatpush2.msra.mxu0 0.0
        %1047 = vmatprep.subr.mxu0 0.0
        %1048 = vmatpush2.msra.mxu0 0.0
        %1049 = vmatprep.subr.mxu0 0.0
        %1050 = vmatpush2.msra.mxu0 0.0
        %1051 = vmatprep.subr.mxu0 0.0
        %1052 = vmatpush2.msra.mxu0 0.0
        %1053 = vmatprep.subr.mxu0 0.0
        %1054 = vmatpush2.msra.mxu0 0.0
        %1055 = vmatprep.subr.mxu0 0.0
        %1056 = vmatpush2.msra.mxu0 0.0
        %1057 = vmatprep.subr.mxu0 0.0
        %1058 = vmatpush2.msra.mxu0 0.0
        %1059 = vmatprep.mubr.f32.mxu0 0.0
        %1060 = vmatmul.mubr.f32.gmra.mxu0 %v993
        %v1061 = vpop.f32.mrf.mxu0
        %v1062 = vadd.f32 0.0, %v1061
        %v1063 = vpop.f32.mrf.mxu0
        %1064 = vdwg.mxu0
        %v1065 = vsel %vm992, %v989, 0
        %1067 = vmatprep.subr.mxu0 0.0
        %1068 = vmatpush1.msra.mxu0 0.0
        %1069 = vmatprep.subr.mxu0 0.0
        %1070 = vmatpush1.msra.mxu0 0.0
        %1071 = vmatprep.subr.mxu0 0.0
        %1072 = vmatpush1.msra.mxu0 0.0
        %1073 = vmatprep.subr.mxu0 0.0
        %1074 = vmatpush1.msra.mxu0 0.0
        %1075 = vmatprep.subr.mxu0 0.0
        %1076 = vmatpush1.msra.mxu0 0.0
        %1077 = vmatprep.subr.mxu0 0.0
        %1078 = vmatpush1.msra.mxu0 0.0
        %1079 = vmatprep.subr.mxu0 0.0
        %1080 = vmatpush1.msra.mxu0 0.0
        %1081 = vmatprep.subr.mxu0 0.0
        %1082 = vmatpush1.msra.mxu0 0.0
        %1083 = vmatprep.subr.mxu0 0.0
        %1084 = vmatpush1.msra.mxu0 0.0
        %1085 = vmatprep.subr.mxu0 0.0
        %1086 = vmatpush1.msra.mxu0 0.0
        %1087 = vmatprep.subr.mxu0 0.0
        %1088 = vmatpush1.msra.mxu0 0.0
        %1089 = vmatprep.subr.mxu0 0.0
        %1090 = vmatpush1.msra.mxu0 0.0
        %1091 = vmatprep.subr.mxu0 0.0
        %1092 = vmatpush1.msra.mxu0 0.0
        %1093 = vmatprep.subr.mxu0 0.0
        %1094 = vmatpush1.msra.mxu0 0.0
        %1095 = vmatprep.subr.mxu0 0.0
        %1096 = vmatpush1.msra.mxu0 0.0
        %1097 = vmatprep.subr.mxu0 0.0
        %1098 = vmatpush1.msra.mxu0 %v991
        %1099 = vmatprep.subr.mxu0 0.0
        %1100 = vmatpush2.msra.mxu0 0.0
        %1101 = vmatprep.subr.mxu0 0.0
        %1102 = vmatpush2.msra.mxu0 0.0
        %1103 = vmatprep.subr.mxu0 0.0
        %1104 = vmatpush2.msra.mxu0 0.0
        %1105 = vmatprep.subr.mxu0 0.0
        %1106 = vmatpush2.msra.mxu0 0.0
        %1107 = vmatprep.subr.mxu0 0.0
        %1108 = vmatpush2.msra.mxu0 0.0
        %1109 = vmatprep.subr.mxu0 0.0
        %1110 = vmatpush2.msra.mxu0 0.0
        %1111 = vmatprep.subr.mxu0 0.0
        %1112 = vmatpush2.msra.mxu0 0.0
        %1113 = vmatprep.subr.mxu0 0.0
        %1114 = vmatpush2.msra.mxu0 0.0
        %1115 = vmatprep.subr.mxu0 0.0
        %1116 = vmatpush2.msra.mxu0 0.0
        %1117 = vmatprep.subr.mxu0 0.0
        %1118 = vmatpush2.msra.mxu0 0.0
        %1119 = vmatprep.subr.mxu0 0.0
        %1120 = vmatpush2.msra.mxu0 0.0
        %1121 = vmatprep.subr.mxu0 0.0
        %1122 = vmatpush2.msra.mxu0 0.0
        %1123 = vmatprep.subr.mxu0 0.0
        %1124 = vmatpush2.msra.mxu0 0.0
        %1125 = vmatprep.subr.mxu0 0.0
        %1126 = vmatpush2.msra.mxu0 0.0
        %1127 = vmatprep.subr.mxu0 0.0
        %1128 = vmatpush2.msra.mxu0 0.0
        %1129 = vmatprep.subr.mxu0 0.0
        %1130 = vmatpush2.msra.mxu0 0.0
        %1131 = vmatprep.mubr.f32.mxu0 0.0
        %1132 = vmatmul.mubr.f32.gmra.mxu0 %v1065
        %v1133 = vpop.f32.mrf.mxu0
        %v1134 = vadd.f32 0.0, %v1133
        %v1135 = vpop.f32.mrf.mxu0
        %1136 = vdwg.mxu0
        %v1137 = vld [vmem:[#allocation11] sm:$0xff]
        %v1138 = vld [vmem:[#allocation11 + $0x8] sm:$0xff]
        %v1139 = vld [vmem:[#allocation11 + $0x10] sm:$0xff]
        %v1140 = vld [vmem:[#allocation11 + $0x18] sm:$0xff]
        %v1141 = vld [vmem:[#allocation12] sm:$0xff]
        %v1142 = vld [vmem:[#allocation12 + $0x8] sm:$0xff]
        %v1143 = vld [vmem:[#allocation12 + $0x10] sm:$0xff]
        %v1144 = vld [vmem:[#allocation12 + $0x18] sm:$0xff]
        %v1145 = vld [vmem:[#allocation12 + $0x20] sm:$0xff]
        %v1146 = vld [vmem:[#allocation12 + $0x28] sm:$0xff]
        %v1147 = vld [vmem:[#allocation12 + $0x30] sm:$0xff]
        %v1148 = vld [vmem:[#allocation12 + $0x38] sm:$0xff]
        %v1151 = vrot.slane %v1134, 7
        %v1152 = vsel %vm963, %v1151, %v1062
        %vm1153 = vcmask 523264
        %v1154 = vsel %vm1153, %v1152, 0
        %1156 = vmatprep.subr.mxu0 0.0
        %1157 = vmatpush1.msra.mxu0 0.0
        %1158 = vmatprep.subr.mxu0 0.0
        %1159 = vmatpush1.msra.mxu0 0.0
        %1160 = vmatprep.subr.mxu0 0.0
        %1161 = vmatpush1.msra.mxu0 0.0
        %1162 = vmatprep.subr.mxu0 0.0
        %1163 = vmatpush1.msra.mxu0 0.0
        %1164 = vmatprep.subr.mxu0 0.0
        %1165 = vmatpush1.msra.mxu0 0.0
        %1166 = vmatprep.subr.mxu0 0.0
        %1167 = vmatpush1.msra.mxu0 0.0
        %1168 = vmatprep.subr.mxu0 0.0
        %1169 = vmatpush1.msra.mxu0 0.0
        %1170 = vmatprep.subr.mxu0 0.0
        %1171 = vmatpush1.msra.mxu0 0.0
        %1172 = vmatprep.subr.mxu0 0.0
        %1173 = vmatpush1.msra.mxu0 %v1148
        %1174 = vmatprep.subr.mxu0 0.0
        %1175 = vmatpush1.msra.mxu0 %v1147
        %1176 = vmatprep.subr.mxu0 0.0
        %1177 = vmatpush1.msra.mxu0 %v1146
        %1178 = vmatprep.subr.mxu0 0.0
        %1179 = vmatpush1.msra.mxu0 %v1145
        %1180 = vmatprep.subr.mxu0 0.0
        %1181 = vmatpush1.msra.mxu0 %v1144
        %1182 = vmatprep.subr.mxu0 0.0
        %1183 = vmatpush1.msra.mxu0 %v1143
        %1184 = vmatprep.subr.mxu0 0.0
        %1185 = vmatpush1.msra.mxu0 %v1142
        %1186 = vmatprep.subr.mxu0 0.0
        %1187 = vmatpush1.msra.mxu0 %v1141
        %1188 = vmatprep.subr.mxu0 0.0
        %1189 = vmatpush2.msra.mxu0 0.0
        %1190 = vmatprep.subr.mxu0 0.0
        %1191 = vmatpush2.msra.mxu0 0.0
        %1192 = vmatprep.subr.mxu0 0.0
        %1193 = vmatpush2.msra.mxu0 0.0
        %1194 = vmatprep.subr.mxu0 0.0
        %1195 = vmatpush2.msra.mxu0 0.0
        %1196 = vmatprep.subr.mxu0 0.0
        %1197 = vmatpush2.msra.mxu0 0.0
        %1198 = vmatprep.subr.mxu0 0.0
        %1199 = vmatpush2.msra.mxu0 0.0
        %1200 = vmatprep.subr.mxu0 0.0
        %1201 = vmatpush2.msra.mxu0 0.0
        %1202 = vmatprep.subr.mxu0 0.0
        %1203 = vmatpush2.msra.mxu0 0.0
        %1204 = vmatprep.subr.mxu0 0.0
        %1205 = vmatpush2.msra.mxu0 0.0
        %1206 = vmatprep.subr.mxu0 0.0
        %1207 = vmatpush2.msra.mxu0 0.0
        %1208 = vmatprep.subr.mxu0 0.0
        %1209 = vmatpush2.msra.mxu0 0.0
        %1210 = vmatprep.subr.mxu0 0.0
        %1211 = vmatpush2.msra.mxu0 0.0
        %1212 = vmatprep.subr.mxu0 0.0
        %1213 = vmatpush2.msra.mxu0 0.0
        %1214 = vmatprep.subr.mxu0 0.0
        %1215 = vmatpush2.msra.mxu0 0.0
        %1216 = vmatprep.subr.mxu0 0.0
        %1217 = vmatpush2.msra.mxu0 0.0
        %1218 = vmatprep.subr.mxu0 0.0
        %1219 = vmatpush2.msra.mxu0 0.0
        %1220 = vmatprep.mubr.f32.mxu0 0.0
        %1221 = vmatmul.mubr.f32.gmra.mxu0 %v1154
        %v1222 = vpop.f32.mrf.mxu0
        %v1223 = vadd.f32 0.0, %v1222
        %v1224 = vpop.f32.mrf.mxu0
        %1225 = vdwg.mxu0
        %v1227 = vsel %vm821, %v808, 0
        %1229 = vmatprep.subr.mxu0 0.0
        %1230 = vmatpush1.msra.mxu0 0.0
        %1231 = vmatprep.subr.mxu0 0.0
        %1232 = vmatpush1.msra.mxu0 0.0
        %1233 = vmatprep.subr.mxu0 0.0
        %1234 = vmatpush1.msra.mxu0 0.0
        %1235 = vmatprep.subr.mxu0 0.0
        %1236 = vmatpush1.msra.mxu0 0.0
        %1237 = vmatprep.subr.mxu0 0.0
        %1238 = vmatpush1.msra.mxu0 0.0
        %1239 = vmatprep.subr.mxu0 0.0
        %1240 = vmatpush1.msra.mxu0 0.0
        %1241 = vmatprep.subr.mxu0 0.0
        %1242 = vmatpush1.msra.mxu0 0.0
        %1243 = vmatprep.subr.mxu0 0.0
        %1244 = vmatpush1.msra.mxu0 0.0
        %1245 = vmatprep.subr.mxu0 0.0
        %1246 = vmatpush1.msra.mxu0 0.0
        %1247 = vmatprep.subr.mxu0 0.0
        %1248 = vmatpush1.msra.mxu0 0.0
        %1249 = vmatprep.subr.mxu0 0.0
        %1250 = vmatpush1.msra.mxu0 0.0
        %1251 = vmatprep.subr.mxu0 0.0
        %1252 = vmatpush1.msra.mxu0 0.0
        %1253 = vmatprep.subr.mxu0 0.0
        %1254 = vmatpush1.msra.mxu0 %v1140
        %1255 = vmatprep.subr.mxu0 0.0
        %1256 = vmatpush1.msra.mxu0 %v1139
        %1257 = vmatprep.subr.mxu0 0.0
        %1258 = vmatpush1.msra.mxu0 %v1138
        %1259 = vmatprep.subr.mxu0 0.0
        %1260 = vmatpush1.msra.mxu0 %v1137
        %1261 = vmatprep.subr.mxu0 0.0
        %1262 = vmatpush2.msra.mxu0 0.0
        %1263 = vmatprep.subr.mxu0 0.0
        %1264 = vmatpush2.msra.mxu0 0.0
        %1265 = vmatprep.subr.mxu0 0.0
        %1266 = vmatpush2.msra.mxu0 0.0
        %1267 = vmatprep.subr.mxu0 0.0
        %1268 = vmatpush2.msra.mxu0 0.0
        %1269 = vmatprep.subr.mxu0 0.0
        %1270 = vmatpush2.msra.mxu0 0.0
        %1271 = vmatprep.subr.mxu0 0.0
        %1272 = vmatpush2.msra.mxu0 0.0
        %1273 = vmatprep.subr.mxu0 0.0
        %1274 = vmatpush2.msra.mxu0 0.0
        %1275 = vmatprep.subr.mxu0 0.0
        %1276 = vmatpush2.msra.mxu0 0.0
        %1277 = vmatprep.subr.mxu0 0.0
        %1278 = vmatpush2.msra.mxu0 0.0
        %1279 = vmatprep.subr.mxu0 0.0
        %1280 = vmatpush2.msra.mxu0 0.0
        %1281 = vmatprep.subr.mxu0 0.0
        %1282 = vmatpush2.msra.mxu0 0.0
        %1283 = vmatprep.subr.mxu0 0.0
        %1284 = vmatpush2.msra.mxu0 0.0
        %1285 = vmatprep.subr.mxu0 0.0
        %1286 = vmatpush2.msra.mxu0 0.0
        %1287 = vmatprep.subr.mxu0 0.0
        %1288 = vmatpush2.msra.mxu0 0.0
        %1289 = vmatprep.subr.mxu0 0.0
        %1290 = vmatpush2.msra.mxu0 0.0
        %1291 = vmatprep.subr.mxu0 0.0
        %1292 = vmatpush2.msra.mxu0 0.0
        %1293 = vmatprep.mubr.f32.mxu0 0.0
        %1294 = vmatmul.mubr.f32.gmra.mxu0 %v1227
        %v1295 = vpop.f32.mrf.mxu0
        %v1296 = vadd.f32 %v1223, %v1295
        %v1297 = vpop.f32.mrf.mxu0
        %1298 = vdwg.mxu0
        %v1299 = vld [vmem:[%s11] sm:$0x1]
        %v1301 = vlaneseq
        %v1302 = vshrl.u32 %v1301, 7
        %v1303 = vsub.s32 0, %v1302
        %v1304 = vrot.slane %v1299, %v1303
        %v1306 = vadd.f32 %v1296, %v1304
        %v1307 = vld [vmem:[#allocation14] sm:$0xff]
        %v1308 = vld [vmem:[#allocation14 + $0x8] sm:$0xff]
        %v1309 = vld [vmem:[#allocation14 + $0x10] sm:$0xff]
        %v1310 = vld [vmem:[#allocation14 + $0x18] sm:$0xff]
        %v1311 = vld [vmem:[%s12] sm:$0x1]
        %v1313 = vlaneseq
        %v1314 = vshrl.u32 %v1313, 7
        %v1315 = vsub.s32 0, %v1314
        %v1316 = vrot.slane %v1311, %v1315
        %1318 = vmatprep.subr.mxu0 0.0
        %1319 = vmatpush1.msra.mxu0 0.0
        %1320 = vmatprep.subr.mxu0 0.0
        %1321 = vmatpush1.msra.mxu0 0.0
        %1322 = vmatprep.subr.mxu0 0.0
        %1323 = vmatpush1.msra.mxu0 0.0
        %1324 = vmatprep.subr.mxu0 0.0
        %1325 = vmatpush1.msra.mxu0 0.0
        %1326 = vmatprep.subr.mxu0 0.0
        %1327 = vmatpush1.msra.mxu0 0.0
        %1328 = vmatprep.subr.mxu0 0.0
        %1329 = vmatpush1.msra.mxu0 0.0
        %1330 = vmatprep.subr.mxu0 0.0
        %1331 = vmatpush1.msra.mxu0 0.0
        %1332 = vmatprep.subr.mxu0 0.0
        %1333 = vmatpush1.msra.mxu0 0.0
        %1334 = vmatprep.subr.mxu0 0.0
        %1335 = vmatpush1.msra.mxu0 0.0
        %1336 = vmatprep.subr.mxu0 0.0
        %1337 = vmatpush1.msra.mxu0 0.0
        %1338 = vmatprep.subr.mxu0 0.0
        %1339 = vmatpush1.msra.mxu0 0.0
        %1340 = vmatprep.subr.mxu0 0.0
        %1341 = vmatpush1.msra.mxu0 0.0
        %1342 = vmatprep.subr.mxu0 0.0
        %1343 = vmatpush1.msra.mxu0 %v1310
        %1344 = vmatprep.subr.mxu0 0.0
        %1345 = vmatpush1.msra.mxu0 %v1309
        %1346 = vmatprep.subr.mxu0 0.0
        %1347 = vmatpush1.msra.mxu0 %v1308
        %1348 = vmatprep.subr.mxu0 0.0
        %1349 = vmatpush1.msra.mxu0 %v1307
        %1350 = vmatprep.subr.mxu0 0.0
        %1351 = vmatpush2.msra.mxu0 0.0
        %1352 = vmatprep.subr.mxu0 0.0
        %1353 = vmatpush2.msra.mxu0 0.0
        %1354 = vmatprep.subr.mxu0 0.0
        %1355 = vmatpush2.msra.mxu0 0.0
        %1356 = vmatprep.subr.mxu0 0.0
        %1357 = vmatpush2.msra.mxu0 0.0
        %1358 = vmatprep.subr.mxu0 0.0
        %1359 = vmatpush2.msra.mxu0 0.0
        %1360 = vmatprep.subr.mxu0 0.0
        %1361 = vmatpush2.msra.mxu0 0.0
        %1362 = vmatprep.subr.mxu0 0.0
        %1363 = vmatpush2.msra.mxu0 0.0
        %1364 = vmatprep.subr.mxu0 0.0
        %1365 = vmatpush2.msra.mxu0 0.0
        %1366 = vmatprep.subr.mxu0 0.0
        %1367 = vmatpush2.msra.mxu0 0.0
        %1368 = vmatprep.subr.mxu0 0.0
        %1369 = vmatpush2.msra.mxu0 0.0
        %1370 = vmatprep.subr.mxu0 0.0
        %1371 = vmatpush2.msra.mxu0 0.0
        %1372 = vmatprep.subr.mxu0 0.0
        %1373 = vmatpush2.msra.mxu0 0.0
        %1374 = vmatprep.subr.mxu0 0.0
        %1375 = vmatpush2.msra.mxu0 0.0
        %1376 = vmatprep.subr.mxu0 0.0
        %1377 = vmatpush2.msra.mxu0 0.0
        %1378 = vmatprep.subr.mxu0 0.0
        %1379 = vmatpush2.msra.mxu0 0.0
        %1380 = vmatprep.subr.mxu0 0.0
        %1381 = vmatpush2.msra.mxu0 0.0
        %1382 = vmatprep.mubr.f32.mxu0 0.0
        %1383 = vmatmul.mubr.f32.gmra.mxu0 %v823
        %v1384 = vpop.f32.mrf.mxu0
        %v1385 = vadd.f32 %v1316, %v1384
        %v1386 = vpop.f32.mrf.mxu0
        %1387 = vdwg.mxu0
        %v1388 = vadd.f32 %v1306, %v1385
        %v1389 = vxor.u32 %v1388, 2147483648
        %v1390 = vmul.f32 %v1389, 1.442695
        %v1391 = vpow.pop %v1390
        %v1392 = vadd.f32 %v1391, 1.0
        %v1393 = vrcp.pop %v1392
        %v1394 = vmul.f32 1.0, %v1393
        %1396 = vrot.lane.b32.xlu0 %v1385, 64
        %v1397 = vpop.permute.xlu0 %1396
        %v1399 = vmul.f32 %v1394, %v1397
        %1401 = vrot.lane.b32.xlu0 %v1399, 64
        %v1402 = vpop.permute.xlu0 %1401
        %v1404 = vadd.f32 %v1306, %v1402
        %v1405 = vtanh.pop %v1404
        %v1406 = vsub.f32 1.0, %v1394
        %1408 = vrot.lane.b32.xlu0 %v1405, 96
        %v1409 = vpop.permute.xlu0 %1408
        %v1411 = vmul.f32 %v1406, %v1409
        %1412 = vrot.lane.b32.xlu0 %v809, 32
        %v1413 = vpop.permute.xlu0 %1412
        %v1415 = vmul.f32 %v1394, %v1413
        %v1416 = vadd.f32 %v1411, %v1415
        %1418 = vrot.lane.b32.xlu0 %v1416, 96
        %v1419 = vpop.permute.xlu0 %1418
        %vm1421 = vcmask 254976
        %1422 = vst.msk [vmem:[#allocation2] sm:$0x3] %vm1421, %v1419
        %1423 = vst.msk [vmem:[%s793] sm:$0x3] %vm1421, %v1419
        %v1424 = vld [vmem:[#allocation15] sm:$0xff]
        %v1425 = vld [vmem:[#allocation15 + $0x8] sm:$0xff]
        %v1426 = vld [vmem:[#allocation15 + $0x10] sm:$0xff]
        %v1427 = vld [vmem:[#allocation15 + $0x18] sm:$0xff]
        %v1428 = vld [vmem:[#allocation17] sm:$0xff]
        %v1429 = vld [vmem:[#allocation17 + $0x8] sm:$0xff]
        %v1430 = vld [vmem:[#allocation17 + $0x10] sm:$0xff]
        %v1431 = vld [vmem:[#allocation17 + $0x18] sm:$0xff]
        %v1432 = vld [vmem:[#allocation17 + $0x20] sm:$0xff]
        %v1433 = vld [vmem:[#allocation17 + $0x28] sm:$0xff]
        %v1434 = vld [vmem:[#allocation17 + $0x30] sm:$0xff]
        %v1435 = vld [vmem:[#allocation17 + $0x38] sm:$0xff]
        %1436 = vmatprep.subr.mxu0 0.0
        %1437 = vmatpush1.msra.mxu0 0.0
        %1438 = vmatprep.subr.mxu0 0.0
        %1439 = vmatpush1.msra.mxu0 0.0
        %1440 = vmatprep.subr.mxu0 0.0
        %1441 = vmatpush1.msra.mxu0 0.0
        %1442 = vmatprep.subr.mxu0 0.0
        %1443 = vmatpush1.msra.mxu0 0.0
        %1444 = vmatprep.subr.mxu0 0.0
        %1445 = vmatpush1.msra.mxu0 0.0
        %1446 = vmatprep.subr.mxu0 0.0
        %1447 = vmatpush1.msra.mxu0 0.0
        %1448 = vmatprep.subr.mxu0 0.0
        %1449 = vmatpush1.msra.mxu0 0.0
        %1450 = vmatprep.subr.mxu0 0.0
        %1451 = vmatpush1.msra.mxu0 0.0
        %1452 = vmatprep.subr.mxu0 0.0
        %1453 = vmatpush1.msra.mxu0 %v1435
        %1454 = vmatprep.subr.mxu0 0.0
        %1455 = vmatpush1.msra.mxu0 %v1434
        %1456 = vmatprep.subr.mxu0 0.0
        %1457 = vmatpush1.msra.mxu0 %v1433
        %1458 = vmatprep.subr.mxu0 0.0
        %1459 = vmatpush1.msra.mxu0 %v1432
        %1460 = vmatprep.subr.mxu0 0.0
        %1461 = vmatpush1.msra.mxu0 %v1431
        %1462 = vmatprep.subr.mxu0 0.0
        %1463 = vmatpush1.msra.mxu0 %v1430
        %1464 = vmatprep.subr.mxu0 0.0
        %1465 = vmatpush1.msra.mxu0 %v1429
        %1466 = vmatprep.subr.mxu0 0.0
        %1467 = vmatpush1.msra.mxu0 %v1428
        %1468 = vmatprep.subr.mxu0 0.0
        %1469 = vmatpush2.msra.mxu0 0.0
        %1470 = vmatprep.subr.mxu0 0.0
        %1471 = vmatpush2.msra.mxu0 0.0
        %1472 = vmatprep.subr.mxu0 0.0
        %1473 = vmatpush2.msra.mxu0 0.0
        %1474 = vmatprep.subr.mxu0 0.0
        %1475 = vmatpush2.msra.mxu0 0.0
        %1476 = vmatprep.subr.mxu0 0.0
        %1477 = vmatpush2.msra.mxu0 0.0
        %1478 = vmatprep.subr.mxu0 0.0
        %1479 = vmatpush2.msra.mxu0 0.0
        %1480 = vmatprep.subr.mxu0 0.0
        %1481 = vmatpush2.msra.mxu0 0.0
        %1482 = vmatprep.subr.mxu0 0.0
        %1483 = vmatpush2.msra.mxu0 0.0
        %1484 = vmatprep.subr.mxu0 0.0
        %1485 = vmatpush2.msra.mxu0 0.0
        %1486 = vmatprep.subr.mxu0 0.0
        %1487 = vmatpush2.msra.mxu0 0.0
        %1488 = vmatprep.subr.mxu0 0.0
        %1489 = vmatpush2.msra.mxu0 0.0
        %1490 = vmatprep.subr.mxu0 0.0
        %1491 = vmatpush2.msra.mxu0 0.0
        %1492 = vmatprep.subr.mxu0 0.0
        %1493 = vmatpush2.msra.mxu0 0.0
        %1494 = vmatprep.subr.mxu0 0.0
        %1495 = vmatpush2.msra.mxu0 0.0
        %1496 = vmatprep.subr.mxu0 0.0
        %1497 = vmatpush2.msra.mxu0 0.0
        %1498 = vmatprep.subr.mxu0 0.0
        %1499 = vmatpush2.msra.mxu0 0.0
        %1500 = vmatprep.mubr.f32.mxu0 0.0
        %1501 = vmatmul.mubr.f32.gmra.mxu0 %v1154
        %v1502 = vpop.f32.mrf.mxu0
        %v1503 = vadd.f32 0.0, %v1502
        %v1504 = vpop.f32.mrf.mxu0
        %1505 = vdwg.mxu0
        %1506 = vmatprep.subr.mxu0 0.0
        %1507 = vmatpush1.msra.mxu0 0.0
        %1508 = vmatprep.subr.mxu0 0.0
        %1509 = vmatpush1.msra.mxu0 0.0
        %1510 = vmatprep.subr.mxu0 0.0
        %1511 = vmatpush1.msra.mxu0 0.0
        %1512 = vmatprep.subr.mxu0 0.0
        %1513 = vmatpush1.msra.mxu0 0.0
        %1514 = vmatprep.subr.mxu0 0.0
        %1515 = vmatpush1.msra.mxu0 0.0
        %1516 = vmatprep.subr.mxu0 0.0
        %1517 = vmatpush1.msra.mxu0 0.0
        %1518 = vmatprep.subr.mxu0 0.0
        %1519 = vmatpush1.msra.mxu0 0.0
        %1520 = vmatprep.subr.mxu0 0.0
        %1521 = vmatpush1.msra.mxu0 0.0
        %1522 = vmatprep.subr.mxu0 0.0
        %1523 = vmatpush1.msra.mxu0 0.0
        %1524 = vmatprep.subr.mxu0 0.0
        %1525 = vmatpush1.msra.mxu0 0.0
        %1526 = vmatprep.subr.mxu0 0.0
        %1527 = vmatpush1.msra.mxu0 0.0
        %1528 = vmatprep.subr.mxu0 0.0
        %1529 = vmatpush1.msra.mxu0 0.0
        %1530 = vmatprep.subr.mxu0 0.0
        %1531 = vmatpush1.msra.mxu0 %v1427
        %1532 = vmatprep.subr.mxu0 0.0
        %1533 = vmatpush1.msra.mxu0 %v1426
        %1534 = vmatprep.subr.mxu0 0.0
        %1535 = vmatpush1.msra.mxu0 %v1425
        %1536 = vmatprep.subr.mxu0 0.0
        %1537 = vmatpush1.msra.mxu0 %v1424
        %1538 = vmatprep.subr.mxu0 0.0
        %1539 = vmatpush2.msra.mxu0 0.0
        %1540 = vmatprep.subr.mxu0 0.0
        %1541 = vmatpush2.msra.mxu0 0.0
        %1542 = vmatprep.subr.mxu0 0.0
        %1543 = vmatpush2.msra.mxu0 0.0
        %1544 = vmatprep.subr.mxu0 0.0
        %1545 = vmatpush2.msra.mxu0 0.0
        %1546 = vmatprep.subr.mxu0 0.0
        %1547 = vmatpush2.msra.mxu0 0.0
        %1548 = vmatprep.subr.mxu0 0.0
        %1549 = vmatpush2.msra.mxu0 0.0
        %1550 = vmatprep.subr.mxu0 0.0
        %1551 = vmatpush2.msra.mxu0 0.0
        %1552 = vmatprep.subr.mxu0 0.0
        %1553 = vmatpush2.msra.mxu0 0.0
        %1554 = vmatprep.subr.mxu0 0.0
        %1555 = vmatpush2.msra.mxu0 0.0
        %1556 = vmatprep.subr.mxu0 0.0
        %1557 = vmatpush2.msra.mxu0 0.0
        %1558 = vmatprep.subr.mxu0 0.0
        %1559 = vmatpush2.msra.mxu0 0.0
        %1560 = vmatprep.subr.mxu0 0.0
        %1561 = vmatpush2.msra.mxu0 0.0
        %1562 = vmatprep.subr.mxu0 0.0
        %1563 = vmatpush2.msra.mxu0 0.0
        %1564 = vmatprep.subr.mxu0 0.0
        %1565 = vmatpush2.msra.mxu0 0.0
        %1566 = vmatprep.subr.mxu0 0.0
        %1567 = vmatpush2.msra.mxu0 0.0
        %1568 = vmatprep.subr.mxu0 0.0
        %1569 = vmatpush2.msra.mxu0 0.0
        %1570 = vmatprep.mubr.f32.mxu0 0.0
        %1571 = vmatmul.mubr.f32.gmra.mxu0 %v823
        %v1572 = vpop.f32.mrf.mxu0
        %v1573 = vadd.f32 %v1503, %v1572
        %v1574 = vpop.f32.mrf.mxu0
        %1575 = vdwg.mxu0
        %v1576 = vld [vmem:[#allocation18] sm:$0xff]
        %v1577 = vld [vmem:[#allocation18 + $0x8] sm:$0xff]
        %v1578 = vld [vmem:[#allocation18 + $0x10] sm:$0xff]
        %v1579 = vld [vmem:[#allocation18 + $0x18] sm:$0xff]
        %1580 = vmatprep.subr.mxu0 0.0
        %1581 = vmatpush1.msra.mxu0 0.0
        %1582 = vmatprep.subr.mxu0 0.0
        %1583 = vmatpush1.msra.mxu0 0.0
        %1584 = vmatprep.subr.mxu0 0.0
        %1585 = vmatpush1.msra.mxu0 0.0
        %1586 = vmatprep.subr.mxu0 0.0
        %1587 = vmatpush1.msra.mxu0 0.0
        %1588 = vmatprep.subr.mxu0 0.0
        %1589 = vmatpush1.msra.mxu0 0.0
        %1590 = vmatprep.subr.mxu0 0.0
        %1591 = vmatpush1.msra.mxu0 0.0
        %1592 = vmatprep.subr.mxu0 0.0
        %1593 = vmatpush1.msra.mxu0 0.0
        %1594 = vmatprep.subr.mxu0 0.0
        %1595 = vmatpush1.msra.mxu0 0.0
        %1596 = vmatprep.subr.mxu0 0.0
        %1597 = vmatpush1.msra.mxu0 0.0
        %1598 = vmatprep.subr.mxu0 0.0
        %1599 = vmatpush1.msra.mxu0 0.0
        %1600 = vmatprep.subr.mxu0 0.0
        %1601 = vmatpush1.msra.mxu0 0.0
        %1602 = vmatprep.subr.mxu0 0.0
        %1603 = vmatpush1.msra.mxu0 0.0
        %1604 = vmatprep.subr.mxu0 0.0
        %1605 = vmatpush1.msra.mxu0 %v1579
        %1606 = vmatprep.subr.mxu0 0.0
        %1607 = vmatpush1.msra.mxu0 %v1578
        %1608 = vmatprep.subr.mxu0 0.0
        %1609 = vmatpush1.msra.mxu0 %v1577
        %1610 = vmatprep.subr.mxu0 0.0
        %1611 = vmatpush1.msra.mxu0 %v1576
        %1612 = vmatprep.subr.mxu0 0.0
        %1613 = vmatpush2.msra.mxu0 0.0
        %1614 = vmatprep.subr.mxu0 0.0
        %1615 = vmatpush2.msra.mxu0 0.0
        %1616 = vmatprep.subr.mxu0 0.0
        %1617 = vmatpush2.msra.mxu0 0.0
        %1618 = vmatprep.subr.mxu0 0.0
        %1619 = vmatpush2.msra.mxu0 0.0
        %1620 = vmatprep.subr.mxu0 0.0
        %1621 = vmatpush2.msra.mxu0 0.0
        %1622 = vmatprep.subr.mxu0 0.0
        %1623 = vmatpush2.msra.mxu0 0.0
        %1624 = vmatprep.subr.mxu0 0.0
        %1625 = vmatpush2.msra.mxu0 0.0
        %1626 = vmatprep.subr.mxu0 0.0
        %1627 = vmatpush2.msra.mxu0 0.0
        %1628 = vmatprep.subr.mxu0 0.0
        %1629 = vmatpush2.msra.mxu0 0.0
        %1630 = vmatprep.subr.mxu0 0.0
        %1631 = vmatpush2.msra.mxu0 0.0
        %1632 = vmatprep.subr.mxu0 0.0
        %1633 = vmatpush2.msra.mxu0 0.0
        %1634 = vmatprep.subr.mxu0 0.0
        %1635 = vmatpush2.msra.mxu0 0.0
        %1636 = vmatprep.subr.mxu0 0.0
        %1637 = vmatpush2.msra.mxu0 0.0
        %1638 = vmatprep.subr.mxu0 0.0
        %1639 = vmatpush2.msra.mxu0 0.0
        %1640 = vmatprep.subr.mxu0 0.0
        %1641 = vmatpush2.msra.mxu0 0.0
        %1642 = vmatprep.subr.mxu0 0.0
        %1643 = vmatpush2.msra.mxu0 0.0
        %1644 = vmatprep.mubr.f32.mxu0 0.0
        %1645 = vmatmul.mubr.f32.gmra.mxu0 %v1227
        %v1646 = vpop.f32.mrf.mxu0
        %v1647 = vadd.f32 0.0, %v1646
        %v1648 = vpop.f32.mrf.mxu0
        %1649 = vdwg.mxu0
        %v1650 = vadd.f32 %v1573, %v1647
        %v1651 = vld [vmem:[%s16] sm:$0x1]
        %v1653 = vlaneseq
        %v1654 = vshrl.u32 %v1653, 7
        %v1655 = vsub.s32 0, %v1654
        %v1656 = vrot.slane %v1651, %v1655
        %v1658 = vadd.f32 %v1650, %v1656
        %1660 = vrot.lane.b32.xlu0 %v1658, 96
        %v1661 = vpop.permute.xlu0 %1660
        %v1663 = vmax.f32 %v1658, %v1661
        %v1664 = vld [vmem:[#allocation20] sm:$0xff]
        %v1665 = vld [vmem:[#allocation20 + $0x8] sm:$0xff]
        %v1666 = vld [vmem:[#allocation20 + $0x10] sm:$0xff]
        %v1667 = vld [vmem:[#allocation20 + $0x18] sm:$0xff]
        %v1668 = vld [vmem:[%s18] sm:$0x1]
        %v1670 = vlaneseq
        %v1671 = vshrl.u32 %v1670, 7
        %v1672 = vsub.s32 0, %v1671
        %v1673 = vrot.slane %v1668, %v1672
        %v1676 = vsel %vm821, %v1663, 0
        %1678 = vmatprep.subr.mxu0 0.0
        %1679 = vmatpush1.msra.mxu0 0.0
        %1680 = vmatprep.subr.mxu0 0.0
        %1681 = vmatpush1.msra.mxu0 0.0
        %1682 = vmatprep.subr.mxu0 0.0
        %1683 = vmatpush1.msra.mxu0 0.0
        %1684 = vmatprep.subr.mxu0 0.0
        %1685 = vmatpush1.msra.mxu0 0.0
        %1686 = vmatprep.subr.mxu0 0.0
        %1687 = vmatpush1.msra.mxu0 0.0
        %1688 = vmatprep.subr.mxu0 0.0
        %1689 = vmatpush1.msra.mxu0 0.0
        %1690 = vmatprep.subr.mxu0 0.0
        %1691 = vmatpush1.msra.mxu0 0.0
        %1692 = vmatprep.subr.mxu0 0.0
        %1693 = vmatpush1.msra.mxu0 0.0
        %1694 = vmatprep.subr.mxu0 0.0
        %1695 = vmatpush1.msra.mxu0 0.0
        %1696 = vmatprep.subr.mxu0 0.0
        %1697 = vmatpush1.msra.mxu0 0.0
        %1698 = vmatprep.subr.mxu0 0.0
        %1699 = vmatpush1.msra.mxu0 0.0
        %1700 = vmatprep.subr.mxu0 0.0
        %1701 = vmatpush1.msra.mxu0 0.0
        %1702 = vmatprep.subr.mxu0 0.0
        %1703 = vmatpush1.msra.mxu0 %v1667
        %1704 = vmatprep.subr.mxu0 0.0
        %1705 = vmatpush1.msra.mxu0 %v1666
        %1706 = vmatprep.subr.mxu0 0.0
        %1707 = vmatpush1.msra.mxu0 %v1665
        %1708 = vmatprep.subr.mxu0 0.0
        %1709 = vmatpush1.msra.mxu0 %v1664
        %1710 = vmatprep.subr.mxu0 0.0
        %1711 = vmatpush2.msra.mxu0 0.0
        %1712 = vmatprep.subr.mxu0 0.0
        %1713 = vmatpush2.msra.mxu0 0.0
        %1714 = vmatprep.subr.mxu0 0.0
        %1715 = vmatpush2.msra.mxu0 0.0
        %1716 = vmatprep.subr.mxu0 0.0
        %1717 = vmatpush2.msra.mxu0 0.0
        %1718 = vmatprep.subr.mxu0 0.0
        %1719 = vmatpush2.msra.mxu0 0.0
        %1720 = vmatprep.subr.mxu0 0.0
        %1721 = vmatpush2.msra.mxu0 0.0
        %1722 = vmatprep.subr.mxu0 0.0
        %1723 = vmatpush2.msra.mxu0 0.0
        %1724 = vmatprep.subr.mxu0 0.0
        %1725 = vmatpush2.msra.mxu0 0.0
        %1726 = vmatprep.subr.mxu0 0.0
        %1727 = vmatpush2.msra.mxu0 0.0
        %1728 = vmatprep.subr.mxu0 0.0
        %1729 = vmatpush2.msra.mxu0 0.0
        %1730 = vmatprep.subr.mxu0 0.0
        %1731 = vmatpush2.msra.mxu0 0.0
        %1732 = vmatprep.subr.mxu0 0.0
        %1733 = vmatpush2.msra.mxu0 0.0
        %1734 = vmatprep.subr.mxu0 0.0
        %1735 = vmatpush2.msra.mxu0 0.0
        %1736 = vmatprep.subr.mxu0 0.0
        %1737 = vmatpush2.msra.mxu0 0.0
        %1738 = vmatprep.subr.mxu0 0.0
        %1739 = vmatpush2.msra.mxu0 0.0
        %1740 = vmatprep.subr.mxu0 0.0
        %1741 = vmatpush2.msra.mxu0 0.0
        %1742 = vmatprep.mubr.f32.mxu0 0.0
        %1743 = vmatmul.mubr.f32.gmra.mxu0 %v1676
        %v1744 = vpop.f32.mrf.mxu0
        %v1745 = vadd.f32 %v1673, %v1744
        %v1746 = vpop.f32.mrf.mxu0
        %1747 = vdwg.mxu0
        %vm1748 = vcmask 517120
        %v1749 = vsel %vm1748, %v1745, -inf
        %1750 = vmax.xlane.f32.xlu0 %v1749
        %v1751 = vpop.xlane.xlu0 %1750
        %v1752 = vsub.f32 %v1745, %v1751
        %v1753 = vmul.f32 %v1752, 1.442695
        %v1754 = vpow.pop %v1753
        %v1755 = vsel %vm1748, %v1754, 0.0
        %1756 = vadd.xlane.f32.xlu0 %v1755
        %v1757 = vpop.xlane.xlu0 %1756
        %v1758 = vlog2.pop %v1757
        %v1759 = vmul.f32 %v1758, 0.6931472
        %v1760 = vsub.f32 %v1752, %v1759
        %1761 = vst.msk [vmem:[%s800] sm:$0x3] %vm1748, %v1760
        %s1762 = sand.u32 %s458, 1
        %s1763 = scalar_lea.sflag [#allocation5], %s1762
        %s1764 = sand.u32 %s458, 1
        %s1765 = smul.addr %s1764, 2
        %s1766 = scalar_lea.vmem [#allocation21], %s1765
        %s1767 = sand.u32 %s484, 1
        %s1768 = scalar_lea.sflag [#allocation23], %s1767
        %s1769 = sand.u32 %s484, 1
        %s1770 = smul.addr %s1769, 2
        %s1771 = scalar_lea.vmem [#allocation22], %s1770
        // Predicated region
        $region145: #{tpu_custom_call.1} parent=95 // pred_check
          %p1772 = pneg %p468
        $region146: #{tpu_custom_call.1} parent=95 // pred_check_branch
          %1774 = sbr.rel (%p1772) target = $region148
        $region147: #{tpu_custom_call.1} parent=95 // pred_region
          %s1776 = ssub.s32 32, 32
          %1777 = vsyncadd %s1763, %s1776
          %s1778 = smul.addr %s46, 32
          %s1779 = scalar_lea.hbm %s19, %s1778
          %s1781 = sshll.u32 %s1766, 4
          %s1782 = int_to_ptr.vmem [resolvable:$true] %s1781
          %1784 = dma.vmem_to_hbm [thread:$0]  %s1782, 32, %s1779, %s1763
        $region148: #{tpu_custom_call.1} parent=95 // pred_fallthru
          _
        // Predicated region
        $region149: #{tpu_custom_call.1} parent=95 // pred_check
          %p1785 = pneg %p494
        $region150: #{tpu_custom_call.1} parent=95 // pred_check_branch
          %1787 = sbr.rel (%p1785) target = $region152
        $region151: #{tpu_custom_call.1} parent=95 // pred_region
          %s1789 = ssub.s32 32, 32
          %1790 = vsyncadd %s1768, %s1789
          %s1791 = smul.addr %s46, 32
          %s1792 = scalar_lea.hbm %s20, %s1791
          %s1794 = sshll.u32 %s1771, 4
          %s1795 = int_to_ptr.vmem [resolvable:$true] %s1794
          %1797 = dma.vmem_to_hbm [thread:$0]  %s1795, 32, %s1792, %s1768
        $region152: #{tpu_custom_call.1} parent=95 // pred_fallthru
          _
      $region96: #{tpu_custom_call.1} parent=5 // pred_fallthru
        _
      %p1798 = scmp.le.s32.totalorder 2, %s41
      // Predicated region
      $region153: #{tpu_custom_call.1} parent=5 // pred_check
        %p1799 = pneg %p1798
      $region154: #{tpu_custom_call.1} parent=5 // pred_check_branch
        %1801 = sbr.rel (%p1799) target = $region156
      $region155: #{tpu_custom_call.1} parent=5 // pred_region
        %s1802 = ssub.s32 %s41, 2
        // Predicated region
        $region157: #{tpu_custom_call.1} parent=155 // pred_check
          %p1803 = pneg %p474
        $region158: #{tpu_custom_call.1} parent=155 // pred_check_branch
          %1805 = sbr.rel (%p1803) target = $region160
        $region159: #{tpu_custom_call.1} parent=155 // pred_region
          %s1806 = sand.u32 %s459, 1
          %s1807 = scalar_lea.sflag [#allocation5], %s1806
          %s1808 = sand.u32 %s459, 1
          %s1809 = smul.addr %s1808, 2
          %s1810 = scalar_lea.vmem [#allocation21], %s1809
          %1811 = dma.done %s1807, 32
        $region160: #{tpu_custom_call.1} parent=155 // pred_fallthru
          _
        // Predicated region
        $region161: #{tpu_custom_call.1} parent=155 // pred_check
          %p1812 = pneg %p500
        $region162: #{tpu_custom_call.1} parent=155 // pred_check_branch
          %1814 = sbr.rel (%p1812) target = $region164
        $region163: #{tpu_custom_call.1} parent=155 // pred_region
          %s1815 = sand.u32 %s485, 1
          %s1816 = scalar_lea.sflag [#allocation23], %s1815
          %s1817 = sand.u32 %s485, 1
          %s1818 = smul.addr %s1817, 2
          %s1819 = scalar_lea.vmem [#allocation22], %s1818
          %1820 = dma.done %s1816, 32
        $region164: #{tpu_custom_call.1} parent=155 // pred_fallthru
          _
      $region156: #{tpu_custom_call.1} parent=5 // pred_fallthru
        _
    $region6: #{tpu_custom_call.1} parent=1 // loop_footer
      %s45 = sadd.s32 1, %s41
    $region7: #{tpu_custom_call.1} parent=1 // loop_footer_branch
      %40 = sbr.rel target = $region3
    $region8: #{tpu_custom_call.1} parent=1 // loop_exit
      _
    %1821 = vsyncpa [#allocation4], 1
    %s1822 = scalar_lea.sflag [#allocation4], 1
    %1823 = vsyncpa %s1822, 1
    %1824 = vsyncpa [#allocation7], 1
    %1825 = vsyncpa [#allocation10], 1
    %1826 = vsyncpa [#allocation13], 1
    %1827 = vsyncpa [#allocation16], 1
    %1828 = vsyncpa [#allocation19], 1
    %1829 = vsyncpa [#allocation5], 1
    %s1830 = scalar_lea.sflag [#allocation5], 1
    %1831 = vsyncpa %s1830, 1
    %1832 = vsyncpa [#allocation23], 1
    %s1833 = scalar_lea.sflag [#allocation23], 1
    %1834 = vsyncpa %s1833, 1

</llo_original>
